<compile_context>
chip_gen: v7x
topology: tpu7x:2x2x1
jax: 0.10.0
libtpu: 0.0.40
codegen_flags: <defaults>
</compile_context>

<pallas_src>
import jax
import jax.numpy as jnp
from jax.experimental import pallas as pl
from jax.experimental.pallas import tpu as pltpu

EMBED_DIM = 16
NUM_FIELDS = 4
NUM_CROSS = 6
INPUT_DIM = EMBED_DIM * 5          # 80 (logical feature width)
D_PAD = 128                        # lane-dense padded feature width
MLP_H1 = 128
MLP_H2 = 64
MLP_H2_PAD = 128
LN_EPS = 1e-5
MAX_TILE_B = 1024                  # batch rows per grid step at large B
SPLIT_MIN_B = 256                  # below this, a single full-array tile


def dcnv2_kernel(x0_ref,              # (TILE_B, 128) bf16, lanes >= 80 are zero
                 cw_ref, cb_ref,      # (6, 128, 128) bf16, (6, 1, 128) f32
                 g_ref, be_ref,       # (6, 1, 128) f32, (6, 1, 128) f32
                 w1_ref, b1_ref,      # (128, 128) bf16, (1, 128) f32
                 w2_ref, b2_ref,      # (128, 128) bf16 (cols >= 64 zero), (1, 128) f32
                 w3_ref, b3_ref,      # (1, 128) bf16, (1, 1) f32
                 out_ref):            # (1, TILE_B) f32
    x0b = x0_ref[...]                           # bf16 copy (dot operand)
    x0 = x0b.astype(jnp.float32)                # f32 for the elementwise path
    x = x0
    xb = x0b
    inv_d = jnp.float32(1.0 / INPUT_DIM)

    # Cross layers: x = LayerNorm(x0 * Linear(x) + x).
    # Padded lanes of h are exactly 0 (zero weight cols, zero cb), so the plain
    # sums over 128 lanes equal the sums over the 80 real lanes; gamma/beta pads
    # are 0 so x's padded lanes stay exactly 0 after every layer.
    for l in range(NUM_CROSS):
        lin = jnp.dot(xb, cw_ref[l], preferred_element_type=jnp.float32) + cb_ref[l]
        h = x0 * lin + x
        mean = jnp.sum(h, axis=-1, keepdims=True) * inv_d
        ex2 = jnp.sum(h * h, axis=-1, keepdims=True) * inv_d
        var = ex2 - mean * mean
        hn = (h - mean) * jax.lax.rsqrt(var + LN_EPS)
        x = hn * g_ref[l] + be_ref[l]
        xb = x.astype(jnp.bfloat16)

    # MLP head (Dropout is identity at inference).
    h1 = jnp.maximum(
        jnp.dot(xb, w1_ref[...], preferred_element_type=jnp.float32) + b1_ref[...], 0.0)
    h1b = h1.astype(jnp.bfloat16)
    h2 = jnp.maximum(
        jnp.dot(h1b, w2_ref[...], preferred_element_type=jnp.float32) + b2_ref[...], 0.0)
    h2b = h2.astype(jnp.bfloat16)

    # Final 64->1 projection as a contraction over the (zero-padded) hidden dim;
    # result is a lane-major (1, TILE_B) row so the output store is lane-dense.
    logits = jax.lax.dot_general(
        w3_ref[...], h2b,
        dimension_numbers=(((1,), (1,)), ((), ())),
        preferred_element_type=jnp.float32)                 # (1, TILE_B)
    out_ref[...] = (logits + b3_ref[...]).astype(out_ref.dtype)


def _const_spec(shape):
    # Whole-array block, same block every grid step (stays VMEM-resident).
    return pl.BlockSpec(shape, lambda i: tuple(0 for _ in shape))


def _choose_tiling(b):
    """Pick (tile_b, num_tiles) for the batch grid."""
    if b < SPLIT_MIN_B:
        # Single tile: block == full array, so no 128-lane constraint on the
        # output block; round to bf16 sublane-pack granularity only.
        tile_b = max(16, -(-b // 16) * 16)
        return tile_b, 1
    # Multi-tile: tile_b must be a multiple of 128 so the (1, tile_b) output
    # blocks stay lane-aligned.  Minimize padding waste, tie-break on fewer
    # grid steps, and keep >= 2 steps so both v7x TensorCores get work.
    best = None
    for tb in range(128, MAX_TILE_B + 1, 128):
        nt = -(-b // tb)
        if nt < 2:
            continue
        cand = (nt * tb - b, nt, tb)
        if best is None or cand < best:
            best = cand
    _, num_tiles, tile_b = best
    return tile_b, num_tiles


def _pack_params(params):
    """Zero-pad weights to lane-dense shapes; matmul operands stored in bf16."""
    cw = jnp.zeros((NUM_CROSS, D_PAD, D_PAD), jnp.float32)
    cw = cw.at[:, :INPUT_DIM, :INPUT_DIM].set(params["cw"]).astype(jnp.bfloat16)
    cb = jnp.zeros((NUM_CROSS, 1, D_PAD), jnp.float32).at[:, 0, :INPUT_DIM].set(params["cb"])
    gamma = jnp.zeros((NUM_CROSS, 1, D_PAD), jnp.float32).at[:, 0, :INPUT_DIM].set(params["gamma"])
    beta = jnp.zeros((NUM_CROSS, 1, D_PAD), jnp.float32).at[:, 0, :INPUT_DIM].set(params["beta"])
    w1 = jnp.zeros((D_PAD, MLP_H1), jnp.float32).at[:INPUT_DIM, :].set(params["w1"]).astype(jnp.bfloat16)
    b1 = params["b1"]                                                   # (1, 128) f32
    w2 = jnp.zeros((MLP_H1, MLP_H2_PAD), jnp.float32).at[:, :MLP_H2].set(params["w2"]).astype(jnp.bfloat16)
    b2 = jnp.zeros((1, MLP_H2_PAD), jnp.float32).at[:, :MLP_H2].set(params["b2"])
    w3 = jnp.zeros((1, MLP_H2_PAD), jnp.float32).at[0, :MLP_H2].set(params["w3"][:, 0]).astype(jnp.bfloat16)
    b3 = params["b3"]                                                   # (1, 1) f32
    return cw, cb, gamma, beta, w1, b1, w2, b2, w3, b3


def prepare_params(params):
    """One-time packing (run eagerly, outside the jitted forward)."""
    return {
        "emb": params["emb"],
        "wp": params["wp"],
        "bp": params["bp"],
        "packed": _pack_params(params),
    }


@jax.jit
def dcnv2_forward(x_cat, price, prepared):
    """x_cat: int32 (4, B); price: f32 (B,). Returns f32 (B,)."""
    # --- glue: embedding lookups, price projection, concat -> x0 [B, 80] ---
    # TODO(synk): fuse the embedding gather / concat into the kernel (scalar-prefetch
    # indices + in-kernel gather) to avoid the HBM round-trip of x0 at large B.
    emb_list = [jnp.take(prepared["emb"][f], x_cat[i], axis=0)
                for i, f in enumerate(["user_id", "item_id", "category", "brand"])]
    price_embed = price[:, None] @ prepared["wp"] + prepared["bp"][None, :]
    x0 = jnp.concatenate(emb_list + [price_embed], axis=1).astype(jnp.float32)

    B = x0.shape[0]
    tile_b, num_tiles = _choose_tiling(B)
    b_pad = num_tiles * tile_b

    # Pad batch (to a tile multiple) and feature dim (80 -> 128) directly in
    # bf16 -- no zeros + dynamic-update-slice materialization, half the HBM read.
    x0p = jnp.pad(x0.astype(jnp.bfloat16),
                  ((0, b_pad - B), (0, D_PAD - INPUT_DIM)))

    out = pl.pallas_call(
        dcnv2_kernel,
        out_shape=jax.ShapeDtypeStruct((1, b_pad), jnp.float32),
        grid=(num_tiles,),
        in_specs=[
            pl.BlockSpec((tile_b, D_PAD), lambda i: (i, 0)),
            _const_spec((NUM_CROSS, D_PAD, D_PAD)),
            _const_spec((NUM_CROSS, 1, D_PAD)),
            _const_spec((NUM_CROSS, 1, D_PAD)),
            _const_spec((NUM_CROSS, 1, D_PAD)),
            _const_spec((D_PAD, MLP_H1)),
            _const_spec((1, MLP_H1)),
            _const_spec((MLP_H1, MLP_H2_PAD)),
            _const_spec((1, MLP_H2_PAD)),
            _const_spec((1, MLP_H2_PAD)),
            _const_spec((1, 1)),
        ],
        out_specs=pl.BlockSpec((1, tile_b), lambda i: (0, i)),
        compiler_params=pltpu.CompilerParams(
            dimension_semantics=("parallel",)),
    )(x0p, *prepared["packed"])
    return out[0, :B]


def init_params(key, field_dims):
    ks = list(jax.random.split(key, 32))
    nxt = iter(ks).__next__

    def linear(in_dim, out_dim):
        # PyTorch-style uniform init; stored transposed as (in_dim, out_dim).
        bound = 1.0 / jnp.sqrt(in_dim)
        w = jax.random.uniform(nxt(), (in_dim, out_dim), jnp.float32, -bound, bound)
        b = jax.random.uniform(nxt(), (out_dim,), jnp.float32, -bound, bound)
        return w, b

    params = {}
    params["emb"] = {name: jax.random.normal(nxt(), (dim, EMBED_DIM), jnp.float32)
                     for name, dim in field_dims.items()}
    wp, bp = linear(1, EMBED_DIM)
    params["wp"], params["bp"] = wp, bp

    cw, cb = [], []
    for _ in range(NUM_CROSS):
        w, b = linear(INPUT_DIM, INPUT_DIM)
        cw.append(w); cb.append(b)
    params["cw"] = jnp.stack(cw)                       # (6, 80, 80)
    params["cb"] = jnp.stack(cb)                       # (6, 80)
    params["gamma"] = jnp.ones((NUM_CROSS, INPUT_DIM), jnp.float32)
    params["beta"] = jnp.zeros((NUM_CROSS, INPUT_DIM), jnp.float32)

    w1, b1 = linear(INPUT_DIM, MLP_H1)
    w2, b2 = linear(MLP_H1, MLP_H2)
    w3, b3 = linear(MLP_H2, 1)
    params["w1"], params["b1"] = w1, b1[None, :]
    params["w2"], params["b2"] = w2, b2[None, :]
    params["w3"], params["b3"] = w3, b3[None, :]
    return params


def _embed_x0(x_cat, price, params):
    emb_list = [jnp.take(params["emb"][f], x_cat[i], axis=0)
                for i, f in enumerate(["user_id", "item_id", "category", "brand"])]
    price_embed = price[:, None] @ params["wp"] + params["bp"][None, :]
    return jnp.concatenate(emb_list + [price_embed], axis=1).astype(jnp.float32)


def reference_forward(x_cat, price, params):
    """Pure-JAX f32 reference mirroring the PyTorch module (eval mode)."""
    x0 = _embed_x0(x_cat, price, params)
    x = x0
    for l in range(NUM_CROSS):
        lin = x @ params["cw"][l] + params["cb"][l][None, :]
        h = x0 * lin + x
        mean = jnp.mean(h, axis=-1, keepdims=True)
        var = jnp.mean((h - mean) ** 2, axis=-1, keepdims=True)
        hn = (h - mean) * jax.lax.rsqrt(var + LN_EPS)
        x = hn * params["gamma"][l][None, :] + params["beta"][l][None, :]
    h1 = jnp.maximum(x @ params["w1"] + params["b1"], 0.0)
    h2 = jnp.maximum(h1 @ params["w2"] + params["b2"], 0.0)
    return (h2 @ params["w3"] + params["b3"])[:, 0]


def reference_forward_mixed(x_cat, price, params):
    """Mixed-precision reference matching the kernel math (bf16 dot operands,
    f32 accumulation and elementwise)."""
    bf = jnp.bfloat16

    def mdot(a, b):
        return jnp.dot(a.astype(bf), b.astype(bf), preferred_element_type=jnp.float32)

    x0 = _embed_x0(x_cat, price, params).astype(bf).astype(jnp.float32)
    x = x0
    for l in range(NUM_CROSS):
        lin = mdot(x, params["cw"][l]) + params["cb"][l][None, :]
        h = x0 * lin + x
        mean = jnp.mean(h, axis=-1, keepdims=True)
        var = jnp.mean(h * h, axis=-1, keepdims=True) - mean * mean
        hn = (h - mean) * jax.lax.rsqrt(var + LN_EPS)
        x = hn * params["gamma"][l][None, :] + params["beta"][l][None, :]
    h1 = jnp.maximum(mdot(x, params["w1"]) + params["b1"], 0.0)
    h2 = jnp.maximum(mdot(h1, params["w2"]) + params["b2"], 0.0)
    return (mdot(h2, params["w3"]) + params["b3"])[:, 0]


if __name__ == "__main__":
    key = jax.random.PRNGKey(0)
    k_param, k_cat, k_price = jax.random.split(key, 3)

    # Synthetic field cardinalities (stand-in for the dataframe-derived ones).
    field_dims = {"user_id": 50, "item_id": 40, "category": 8, "brand": 12}
    params = init_params(k_param, field_dims)
    prepared = prepare_params(params)   # pack/pad weights once, outside jit

    B = 16
    kc = jax.random.split(k_cat, NUM_FIELDS)
    x_cat = jnp.stack([
        jax.random.randint(kc[i], (B,), 0, field_dims[f], dtype=jnp.int32)
        for i, f in enumerate(["user_id", "item_id", "category", "brand"])
    ])                                                  # (4, B) int32
    price = jax.random.normal(k_price, (B,), jnp.float32)

    out = dcnv2_forward(x_cat, price, prepared)
    out = jax.block_until_ready(out)
    assert out.shape == (B,)

    # Tight check vs a mixed-precision (bf16-dot) reference that mirrors the
    # kernel math, plus a loose sanity check vs the pure-f32 reference.
    ref_mixed = reference_forward_mixed(x_cat, price, params)
    ref_f32 = reference_forward(x_cat, price, params)
    assert jnp.allclose(out, ref_mixed, atol=2e-3, rtol=2e-3), (out, ref_mixed)
    assert jnp.allclose(out, ref_f32, atol=5e-2, rtol=5e-2), (out, ref_f32)

    print("KERNEL_OK")
</pallas_src>

<mosaic_0001>
module attributes {stable_mosaic.version = 11 : i64} {
  func.func @dcnv2_kernel(%arg0: i32, %arg1: memref<16x128xbf16, #tpu.memory_space<vmem>>, %arg2: memref<6x128x128xbf16, #tpu.memory_space<vmem>>, %arg3: memref<6x1x128xf32, #tpu.memory_space<vmem>>, %arg4: memref<6x1x128xf32, #tpu.memory_space<vmem>>, %arg5: memref<6x1x128xf32, #tpu.memory_space<vmem>>, %arg6: memref<128x128xbf16, #tpu.memory_space<vmem>>, %arg7: memref<1x128xf32, #tpu.memory_space<vmem>>, %arg8: memref<128x128xbf16, #tpu.memory_space<vmem>>, %arg9: memref<1x128xf32, #tpu.memory_space<vmem>>, %arg10: memref<1x128xbf16, #tpu.memory_space<vmem>>, %arg11: memref<1x1xf32, #tpu.memory_space<vmem>>, %arg12: memref<1x16xf32, #tpu.memory_space<vmem>>) attributes {dimension_semantics = [#tpu.dimension_semantics<parallel>], iteration_bounds = array<i64: 1>, scalar_prefetch = 0 : i64, scratch_operands = 0 : i64, tpu.core_type = #tpu.core_type<tc>, window_params = [{transform_indices = @transform_0, window_bounds = array<i64: 16, 128>}, {pipeline_mode = #tpu.pipeline_mode<synchronous>, transform_indices = @transform_1, window_bounds = array<i64: 6, 128, 128>}, {pipeline_mode = #tpu.pipeline_mode<synchronous>, transform_indices = @transform_2, window_bounds = array<i64: 6, 1, 128>}, {pipeline_mode = #tpu.pipeline_mode<synchronous>, transform_indices = @transform_3, window_bounds = array<i64: 6, 1, 128>}, {pipeline_mode = #tpu.pipeline_mode<synchronous>, transform_indices = @transform_4, window_bounds = array<i64: 6, 1, 128>}, {pipeline_mode = #tpu.pipeline_mode<synchronous>, transform_indices = @transform_5, window_bounds = array<i64: 128, 128>}, {pipeline_mode = #tpu.pipeline_mode<synchronous>, transform_indices = @transform_6, window_bounds = array<i64: 1, 128>}, {pipeline_mode = #tpu.pipeline_mode<synchronous>, transform_indices = @transform_7, window_bounds = array<i64: 128, 128>}, {pipeline_mode = #tpu.pipeline_mode<synchronous>, transform_indices = @transform_8, window_bounds = array<i64: 1, 128>}, {pipeline_mode = #tpu.pipeline_mode<synchronous>, transform_indices = @transform_9, window_bounds = array<i64: 1, 128>}, {pipeline_mode = #tpu.pipeline_mode<synchronous>, transform_indices = @transform_10, window_bounds = array<i64: 1, 1>}, {transform_indices = @transform_11, window_bounds = array<i64: 1, 16>}]} {
    %c0 = arith.constant 0 : index
    %c0_0 = arith.constant 0 : index
    %0 = vector.load %arg1[%c0, %c0_0] : memref<16x128xbf16, #tpu.memory_space<vmem>>, vector<16x128xbf16>
    %1 = arith.extf %0 : vector<16x128xbf16> to vector<16x128xf32>
    %c0_1 = arith.constant 0 : index
    %c0_2 = arith.constant 0 : index
    %c0_3 = arith.constant 0 : index
    %2 = vector.load %arg2[%c0_1, %c0_2, %c0_3] : memref<6x128x128xbf16, #tpu.memory_space<vmem>>, vector<1x128x128xbf16>
    %3 = vector.shape_cast %2 : vector<1x128x128xbf16> to vector<128x128xbf16>
    %cst = arith.constant dense<0.000000e+00> : vector<16x128xf32>
    %4 = tpu.matmul %0, %3, %cst {dimension_numbers = #tpu.dot_dimension_numbers<[1], [0], [0], [1], [0, 0, 1, 1], [], []>} : vector<16x128xbf16>, vector<128x128xbf16>, vector<16x128xf32> -> vector<16x128xf32>
    %c0_4 = arith.constant 0 : index
    %c0_5 = arith.constant 0 : index
    %c0_6 = arith.constant 0 : index
    %5 = vector.load %arg3[%c0_4, %c0_5, %c0_6] : memref<6x1x128xf32, #tpu.memory_space<vmem>>, vector<1x1x128xf32>
    %6 = vector.shape_cast %5 : vector<1x1x128xf32> to vector<1x128xf32>
    %7 = vector.broadcast %6 : vector<1x128xf32> to vector<16x128xf32>
    %8 = arith.addf %4, %7 : vector<16x128xf32>
    %9 = arith.mulf %1, %8 : vector<16x128xf32>
    %10 = arith.addf %9, %1 : vector<16x128xf32>
    %cst_7 = arith.constant dense<0.000000e+00> : vector<16xf32>
    %11 = vector.multi_reduction <add>, %10, %cst_7 [1] : vector<16x128xf32> to vector<16xf32>
    %12 = vector.shape_cast %11 : vector<16xf32> to vector<16x1xf32>
    %cst_8 = arith.constant 1.250000e-02 : f32
    %13 = vector.broadcast %cst_8 : f32 to vector<16x1xf32>
    %14 = arith.mulf %12, %13 : vector<16x1xf32>
    %15 = arith.mulf %10, %10 : vector<16x128xf32>
    %cst_9 = arith.constant dense<0.000000e+00> : vector<16xf32>
    %16 = vector.multi_reduction <add>, %15, %cst_9 [1] : vector<16x128xf32> to vector<16xf32>
    %17 = vector.shape_cast %16 : vector<16xf32> to vector<16x1xf32>
    %cst_10 = arith.constant 1.250000e-02 : f32
    %18 = vector.broadcast %cst_10 : f32 to vector<16x1xf32>
    %19 = arith.mulf %17, %18 : vector<16x1xf32>
    %20 = arith.mulf %14, %14 : vector<16x1xf32>
    %21 = arith.subf %19, %20 : vector<16x1xf32>
    %22 = vector.broadcast %14 : vector<16x1xf32> to vector<16x128xf32>
    %23 = arith.subf %10, %22 : vector<16x128xf32>
    %cst_11 = arith.constant 9.99999974E-6 : f32
    %24 = vector.broadcast %cst_11 : f32 to vector<16x1xf32>
    %25 = arith.addf %21, %24 : vector<16x1xf32>
    %26 = math.rsqrt %25 : vector<16x1xf32>
    %27 = vector.broadcast %26 : vector<16x1xf32> to vector<16x128xf32>
    %28 = arith.mulf %23, %27 : vector<16x128xf32>
    %c0_12 = arith.constant 0 : index
    %c0_13 = arith.constant 0 : index
    %c0_14 = arith.constant 0 : index
    %29 = vector.load %arg4[%c0_12, %c0_13, %c0_14] : memref<6x1x128xf32, #tpu.memory_space<vmem>>, vector<1x1x128xf32>
    %30 = vector.shape_cast %29 : vector<1x1x128xf32> to vector<1x128xf32>
    %31 = vector.broadcast %30 : vector<1x128xf32> to vector<16x128xf32>
    %32 = arith.mulf %28, %31 : vector<16x128xf32>
    %c0_15 = arith.constant 0 : index
    %c0_16 = arith.constant 0 : index
    %c0_17 = arith.constant 0 : index
    %33 = vector.load %arg5[%c0_15, %c0_16, %c0_17] : memref<6x1x128xf32, #tpu.memory_space<vmem>>, vector<1x1x128xf32>
    %34 = vector.shape_cast %33 : vector<1x1x128xf32> to vector<1x128xf32>
    %35 = vector.broadcast %34 : vector<1x128xf32> to vector<16x128xf32>
    %36 = arith.addf %32, %35 : vector<16x128xf32>
    %37 = arith.truncf %36 : vector<16x128xf32> to vector<16x128xbf16>
    %c1 = arith.constant 1 : index
    %c0_18 = arith.constant 0 : index
    %c0_19 = arith.constant 0 : index
    %38 = vector.load %arg2[%c1, %c0_18, %c0_19] : memref<6x128x128xbf16, #tpu.memory_space<vmem>>, vector<1x128x128xbf16>
    %39 = vector.shape_cast %38 : vector<1x128x128xbf16> to vector<128x128xbf16>
    %cst_20 = arith.constant dense<0.000000e+00> : vector<16x128xf32>
    %40 = tpu.matmul %37, %39, %cst_20 {dimension_numbers = #tpu.dot_dimension_numbers<[1], [0], [0], [1], [0, 0, 1, 1], [], []>} : vector<16x128xbf16>, vector<128x128xbf16>, vector<16x128xf32> -> vector<16x128xf32>
    %c1_21 = arith.constant 1 : index
    %c0_22 = arith.constant 0 : index
    %c0_23 = arith.constant 0 : index
    %41 = vector.load %arg3[%c1_21, %c0_22, %c0_23] : memref<6x1x128xf32, #tpu.memory_space<vmem>>, vector<1x1x128xf32>
    %42 = vector.shape_cast %41 : vector<1x1x128xf32> to vector<1x128xf32>
    %43 = vector.broadcast %42 : vector<1x128xf32> to vector<16x128xf32>
    %44 = arith.addf %40, %43 : vector<16x128xf32>
    %45 = arith.mulf %1, %44 : vector<16x128xf32>
    %46 = arith.addf %45, %36 : vector<16x128xf32>
    %cst_24 = arith.constant dense<0.000000e+00> : vector<16xf32>
    %47 = vector.multi_reduction <add>, %46, %cst_24 [1] : vector<16x128xf32> to vector<16xf32>
    %48 = vector.shape_cast %47 : vector<16xf32> to vector<16x1xf32>
    %cst_25 = arith.constant 1.250000e-02 : f32
    %49 = vector.broadcast %cst_25 : f32 to vector<16x1xf32>
    %50 = arith.mulf %48, %49 : vector<16x1xf32>
    %51 = arith.mulf %46, %46 : vector<16x128xf32>
    %cst_26 = arith.constant dense<0.000000e+00> : vector<16xf32>
    %52 = vector.multi_reduction <add>, %51, %cst_26 [1] : vector<16x128xf32> to vector<16xf32>
    %53 = vector.shape_cast %52 : vector<16xf32> to vector<16x1xf32>
    %cst_27 = arith.constant 1.250000e-02 : f32
    %54 = vector.broadcast %cst_27 : f32 to vector<16x1xf32>
    %55 = arith.mulf %53, %54 : vector<16x1xf32>
    %56 = arith.mulf %50, %50 : vector<16x1xf32>
    %57 = arith.subf %55, %56 : vector<16x1xf32>
    %58 = vector.broadcast %50 : vector<16x1xf32> to vector<16x128xf32>
    %59 = arith.subf %46, %58 : vector<16x128xf32>
    %cst_28 = arith.constant 9.99999974E-6 : f32
    %60 = vector.broadcast %cst_28 : f32 to vector<16x1xf32>
    %61 = arith.addf %57, %60 : vector<16x1xf32>
    %62 = math.rsqrt %61 : vector<16x1xf32>
    %63 = vector.broadcast %62 : vector<16x1xf32> to vector<16x128xf32>
    %64 = arith.mulf %59, %63 : vector<16x128xf32>
    %c1_29 = arith.constant 1 : index
    %c0_30 = arith.constant 0 : index
    %c0_31 = arith.constant 0 : index
    %65 = vector.load %arg4[%c1_29, %c0_30, %c0_31] : memref<6x1x128xf32, #tpu.memory_space<vmem>>, vector<1x1x128xf32>
    %66 = vector.shape_cast %65 : vector<1x1x128xf32> to vector<1x128xf32>
    %67 = vector.broadcast %66 : vector<1x128xf32> to vector<16x128xf32>
    %68 = arith.mulf %64, %67 : vector<16x128xf32>
    %c1_32 = arith.constant 1 : index
    %c0_33 = arith.constant 0 : index
    %c0_34 = arith.constant 0 : index
    %69 = vector.load %arg5[%c1_32, %c0_33, %c0_34] : memref<6x1x128xf32, #tpu.memory_space<vmem>>, vector<1x1x128xf32>
    %70 = vector.shape_cast %69 : vector<1x1x128xf32> to vector<1x128xf32>
    %71 = vector.broadcast %70 : vector<1x128xf32> to vector<16x128xf32>
    %72 = arith.addf %68, %71 : vector<16x128xf32>
    %73 = arith.truncf %72 : vector<16x128xf32> to vector<16x128xbf16>
    %c2 = arith.constant 2 : index
    %c0_35 = arith.constant 0 : index
    %c0_36 = arith.constant 0 : index
    %74 = vector.load %arg2[%c2, %c0_35, %c0_36] : memref<6x128x128xbf16, #tpu.memory_space<vmem>>, vector<1x128x128xbf16>
    %75 = vector.shape_cast %74 : vector<1x128x128xbf16> to vector<128x128xbf16>
    %cst_37 = arith.constant dense<0.000000e+00> : vector<16x128xf32>
    %76 = tpu.matmul %73, %75, %cst_37 {dimension_numbers = #tpu.dot_dimension_numbers<[1], [0], [0], [1], [0, 0, 1, 1], [], []>} : vector<16x128xbf16>, vector<128x128xbf16>, vector<16x128xf32> -> vector<16x128xf32>
    %c2_38 = arith.constant 2 : index
    %c0_39 = arith.constant 0 : index
    %c0_40 = arith.constant 0 : index
    %77 = vector.load %arg3[%c2_38, %c0_39, %c0_40] : memref<6x1x128xf32, #tpu.memory_space<vmem>>, vector<1x1x128xf32>
    %78 = vector.shape_cast %77 : vector<1x1x128xf32> to vector<1x128xf32>
    %79 = vector.broadcast %78 : vector<1x128xf32> to vector<16x128xf32>
    %80 = arith.addf %76, %79 : vector<16x128xf32>
    %81 = arith.mulf %1, %80 : vector<16x128xf32>
    %82 = arith.addf %81, %72 : vector<16x128xf32>
    %cst_41 = arith.constant dense<0.000000e+00> : vector<16xf32>
    %83 = vector.multi_reduction <add>, %82, %cst_41 [1] : vector<16x128xf32> to vector<16xf32>
    %84 = vector.shape_cast %83 : vector<16xf32> to vector<16x1xf32>
    %cst_42 = arith.constant 1.250000e-02 : f32
    %85 = vector.broadcast %cst_42 : f32 to vector<16x1xf32>
    %86 = arith.mulf %84, %85 : vector<16x1xf32>
    %87 = arith.mulf %82, %82 : vector<16x128xf32>
    %cst_43 = arith.constant dense<0.000000e+00> : vector<16xf32>
    %88 = vector.multi_reduction <add>, %87, %cst_43 [1] : vector<16x128xf32> to vector<16xf32>
    %89 = vector.shape_cast %88 : vector<16xf32> to vector<16x1xf32>
    %cst_44 = arith.constant 1.250000e-02 : f32
    %90 = vector.broadcast %cst_44 : f32 to vector<16x1xf32>
    %91 = arith.mulf %89, %90 : vector<16x1xf32>
    %92 = arith.mulf %86, %86 : vector<16x1xf32>
    %93 = arith.subf %91, %92 : vector<16x1xf32>
    %94 = vector.broadcast %86 : vector<16x1xf32> to vector<16x128xf32>
    %95 = arith.subf %82, %94 : vector<16x128xf32>
    %cst_45 = arith.constant 9.99999974E-6 : f32
    %96 = vector.broadcast %cst_45 : f32 to vector<16x1xf32>
    %97 = arith.addf %93, %96 : vector<16x1xf32>
    %98 = math.rsqrt %97 : vector<16x1xf32>
    %99 = vector.broadcast %98 : vector<16x1xf32> to vector<16x128xf32>
    %100 = arith.mulf %95, %99 : vector<16x128xf32>
    %c2_46 = arith.constant 2 : index
    %c0_47 = arith.constant 0 : index
    %c0_48 = arith.constant 0 : index
    %101 = vector.load %arg4[%c2_46, %c0_47, %c0_48] : memref<6x1x128xf32, #tpu.memory_space<vmem>>, vector<1x1x128xf32>
    %102 = vector.shape_cast %101 : vector<1x1x128xf32> to vector<1x128xf32>
    %103 = vector.broadcast %102 : vector<1x128xf32> to vector<16x128xf32>
    %104 = arith.mulf %100, %103 : vector<16x128xf32>
    %c2_49 = arith.constant 2 : index
    %c0_50 = arith.constant 0 : index
    %c0_51 = arith.constant 0 : index
    %105 = vector.load %arg5[%c2_49, %c0_50, %c0_51] : memref<6x1x128xf32, #tpu.memory_space<vmem>>, vector<1x1x128xf32>
    %106 = vector.shape_cast %105 : vector<1x1x128xf32> to vector<1x128xf32>
    %107 = vector.broadcast %106 : vector<1x128xf32> to vector<16x128xf32>
    %108 = arith.addf %104, %107 : vector<16x128xf32>
    %109 = arith.truncf %108 : vector<16x128xf32> to vector<16x128xbf16>
    %c3 = arith.constant 3 : index
    %c0_52 = arith.constant 0 : index
    %c0_53 = arith.constant 0 : index
    %110 = vector.load %arg2[%c3, %c0_52, %c0_53] : memref<6x128x128xbf16, #tpu.memory_space<vmem>>, vector<1x128x128xbf16>
    %111 = vector.shape_cast %110 : vector<1x128x128xbf16> to vector<128x128xbf16>
    %cst_54 = arith.constant dense<0.000000e+00> : vector<16x128xf32>
    %112 = tpu.matmul %109, %111, %cst_54 {dimension_numbers = #tpu.dot_dimension_numbers<[1], [0], [0], [1], [0, 0, 1, 1], [], []>} : vector<16x128xbf16>, vector<128x128xbf16>, vector<16x128xf32> -> vector<16x128xf32>
    %c3_55 = arith.constant 3 : index
    %c0_56 = arith.constant 0 : index
    %c0_57 = arith.constant 0 : index
    %113 = vector.load %arg3[%c3_55, %c0_56, %c0_57] : memref<6x1x128xf32, #tpu.memory_space<vmem>>, vector<1x1x128xf32>
    %114 = vector.shape_cast %113 : vector<1x1x128xf32> to vector<1x128xf32>
    %115 = vector.broadcast %114 : vector<1x128xf32> to vector<16x128xf32>
    %116 = arith.addf %112, %115 : vector<16x128xf32>
    %117 = arith.mulf %1, %116 : vector<16x128xf32>
    %118 = arith.addf %117, %108 : vector<16x128xf32>
    %cst_58 = arith.constant dense<0.000000e+00> : vector<16xf32>
    %119 = vector.multi_reduction <add>, %118, %cst_58 [1] : vector<16x128xf32> to vector<16xf32>
    %120 = vector.shape_cast %119 : vector<16xf32> to vector<16x1xf32>
    %cst_59 = arith.constant 1.250000e-02 : f32
    %121 = vector.broadcast %cst_59 : f32 to vector<16x1xf32>
    %122 = arith.mulf %120, %121 : vector<16x1xf32>
    %123 = arith.mulf %118, %118 : vector<16x128xf32>
    %cst_60 = arith.constant dense<0.000000e+00> : vector<16xf32>
    %124 = vector.multi_reduction <add>, %123, %cst_60 [1] : vector<16x128xf32> to vector<16xf32>
    %125 = vector.shape_cast %124 : vector<16xf32> to vector<16x1xf32>
    %cst_61 = arith.constant 1.250000e-02 : f32
    %126 = vector.broadcast %cst_61 : f32 to vector<16x1xf32>
    %127 = arith.mulf %125, %126 : vector<16x1xf32>
    %128 = arith.mulf %122, %122 : vector<16x1xf32>
    %129 = arith.subf %127, %128 : vector<16x1xf32>
    %130 = vector.broadcast %122 : vector<16x1xf32> to vector<16x128xf32>
    %131 = arith.subf %118, %130 : vector<16x128xf32>
    %cst_62 = arith.constant 9.99999974E-6 : f32
    %132 = vector.broadcast %cst_62 : f32 to vector<16x1xf32>
    %133 = arith.addf %129, %132 : vector<16x1xf32>
    %134 = math.rsqrt %133 : vector<16x1xf32>
    %135 = vector.broadcast %134 : vector<16x1xf32> to vector<16x128xf32>
    %136 = arith.mulf %131, %135 : vector<16x128xf32>
    %c3_63 = arith.constant 3 : index
    %c0_64 = arith.constant 0 : index
    %c0_65 = arith.constant 0 : index
    %137 = vector.load %arg4[%c3_63, %c0_64, %c0_65] : memref<6x1x128xf32, #tpu.memory_space<vmem>>, vector<1x1x128xf32>
    %138 = vector.shape_cast %137 : vector<1x1x128xf32> to vector<1x128xf32>
    %139 = vector.broadcast %138 : vector<1x128xf32> to vector<16x128xf32>
    %140 = arith.mulf %136, %139 : vector<16x128xf32>
    %c3_66 = arith.constant 3 : index
    %c0_67 = arith.constant 0 : index
    %c0_68 = arith.constant 0 : index
    %141 = vector.load %arg5[%c3_66, %c0_67, %c0_68] : memref<6x1x128xf32, #tpu.memory_space<vmem>>, vector<1x1x128xf32>
    %142 = vector.shape_cast %141 : vector<1x1x128xf32> to vector<1x128xf32>
    %143 = vector.broadcast %142 : vector<1x128xf32> to vector<16x128xf32>
    %144 = arith.addf %140, %143 : vector<16x128xf32>
    %145 = arith.truncf %144 : vector<16x128xf32> to vector<16x128xbf16>
    %c4 = arith.constant 4 : index
    %c0_69 = arith.constant 0 : index
    %c0_70 = arith.constant 0 : index
    %146 = vector.load %arg2[%c4, %c0_69, %c0_70] : memref<6x128x128xbf16, #tpu.memory_space<vmem>>, vector<1x128x128xbf16>
    %147 = vector.shape_cast %146 : vector<1x128x128xbf16> to vector<128x128xbf16>
    %cst_71 = arith.constant dense<0.000000e+00> : vector<16x128xf32>
    %148 = tpu.matmul %145, %147, %cst_71 {dimension_numbers = #tpu.dot_dimension_numbers<[1], [0], [0], [1], [0, 0, 1, 1], [], []>} : vector<16x128xbf16>, vector<128x128xbf16>, vector<16x128xf32> -> vector<16x128xf32>
    %c4_72 = arith.constant 4 : index
    %c0_73 = arith.constant 0 : index
    %c0_74 = arith.constant 0 : index
    %149 = vector.load %arg3[%c4_72, %c0_73, %c0_74] : memref<6x1x128xf32, #tpu.memory_space<vmem>>, vector<1x1x128xf32>
    %150 = vector.shape_cast %149 : vector<1x1x128xf32> to vector<1x128xf32>
    %151 = vector.broadcast %150 : vector<1x128xf32> to vector<16x128xf32>
    %152 = arith.addf %148, %151 : vector<16x128xf32>
    %153 = arith.mulf %1, %152 : vector<16x128xf32>
    %154 = arith.addf %153, %144 : vector<16x128xf32>
    %cst_75 = arith.constant dense<0.000000e+00> : vector<16xf32>
    %155 = vector.multi_reduction <add>, %154, %cst_75 [1] : vector<16x128xf32> to vector<16xf32>
    %156 = vector.shape_cast %155 : vector<16xf32> to vector<16x1xf32>
    %cst_76 = arith.constant 1.250000e-02 : f32
    %157 = vector.broadcast %cst_76 : f32 to vector<16x1xf32>
    %158 = arith.mulf %156, %157 : vector<16x1xf32>
    %159 = arith.mulf %154, %154 : vector<16x128xf32>
    %cst_77 = arith.constant dense<0.000000e+00> : vector<16xf32>
    %160 = vector.multi_reduction <add>, %159, %cst_77 [1] : vector<16x128xf32> to vector<16xf32>
    %161 = vector.shape_cast %160 : vector<16xf32> to vector<16x1xf32>
    %cst_78 = arith.constant 1.250000e-02 : f32
    %162 = vector.broadcast %cst_78 : f32 to vector<16x1xf32>
    %163 = arith.mulf %161, %162 : vector<16x1xf32>
    %164 = arith.mulf %158, %158 : vector<16x1xf32>
    %165 = arith.subf %163, %164 : vector<16x1xf32>
    %166 = vector.broadcast %158 : vector<16x1xf32> to vector<16x128xf32>
    %167 = arith.subf %154, %166 : vector<16x128xf32>
    %cst_79 = arith.constant 9.99999974E-6 : f32
    %168 = vector.broadcast %cst_79 : f32 to vector<16x1xf32>
    %169 = arith.addf %165, %168 : vector<16x1xf32>
    %170 = math.rsqrt %169 : vector<16x1xf32>
    %171 = vector.broadcast %170 : vector<16x1xf32> to vector<16x128xf32>
    %172 = arith.mulf %167, %171 : vector<16x128xf32>
    %c4_80 = arith.constant 4 : index
    %c0_81 = arith.constant 0 : index
    %c0_82 = arith.constant 0 : index
    %173 = vector.load %arg4[%c4_80, %c0_81, %c0_82] : memref<6x1x128xf32, #tpu.memory_space<vmem>>, vector<1x1x128xf32>
    %174 = vector.shape_cast %173 : vector<1x1x128xf32> to vector<1x128xf32>
    %175 = vector.broadcast %174 : vector<1x128xf32> to vector<16x128xf32>
    %176 = arith.mulf %172, %175 : vector<16x128xf32>
    %c4_83 = arith.constant 4 : index
    %c0_84 = arith.constant 0 : index
    %c0_85 = arith.constant 0 : index
    %177 = vector.load %arg5[%c4_83, %c0_84, %c0_85] : memref<6x1x128xf32, #tpu.memory_space<vmem>>, vector<1x1x128xf32>
    %178 = vector.shape_cast %177 : vector<1x1x128xf32> to vector<1x128xf32>
    %179 = vector.broadcast %178 : vector<1x128xf32> to vector<16x128xf32>
    %180 = arith.addf %176, %179 : vector<16x128xf32>
    %181 = arith.truncf %180 : vector<16x128xf32> to vector<16x128xbf16>
    %c5 = arith.constant 5 : index
    %c0_86 = arith.constant 0 : index
    %c0_87 = arith.constant 0 : index
    %182 = vector.load %arg2[%c5, %c0_86, %c0_87] : memref<6x128x128xbf16, #tpu.memory_space<vmem>>, vector<1x128x128xbf16>
    %183 = vector.shape_cast %182 : vector<1x128x128xbf16> to vector<128x128xbf16>
    %cst_88 = arith.constant dense<0.000000e+00> : vector<16x128xf32>
    %184 = tpu.matmul %181, %183, %cst_88 {dimension_numbers = #tpu.dot_dimension_numbers<[1], [0], [0], [1], [0, 0, 1, 1], [], []>} : vector<16x128xbf16>, vector<128x128xbf16>, vector<16x128xf32> -> vector<16x128xf32>
    %c5_89 = arith.constant 5 : index
    %c0_90 = arith.constant 0 : index
    %c0_91 = arith.constant 0 : index
    %185 = vector.load %arg3[%c5_89, %c0_90, %c0_91] : memref<6x1x128xf32, #tpu.memory_space<vmem>>, vector<1x1x128xf32>
    %186 = vector.shape_cast %185 : vector<1x1x128xf32> to vector<1x128xf32>
    %187 = vector.broadcast %186 : vector<1x128xf32> to vector<16x128xf32>
    %188 = arith.addf %184, %187 : vector<16x128xf32>
    %189 = arith.mulf %1, %188 : vector<16x128xf32>
    %190 = arith.addf %189, %180 : vector<16x128xf32>
    %cst_92 = arith.constant dense<0.000000e+00> : vector<16xf32>
    %191 = vector.multi_reduction <add>, %190, %cst_92 [1] : vector<16x128xf32> to vector<16xf32>
    %192 = vector.shape_cast %191 : vector<16xf32> to vector<16x1xf32>
    %cst_93 = arith.constant 1.250000e-02 : f32
    %193 = vector.broadcast %cst_93 : f32 to vector<16x1xf32>
    %194 = arith.mulf %192, %193 : vector<16x1xf32>
    %195 = arith.mulf %190, %190 : vector<16x128xf32>
    %cst_94 = arith.constant dense<0.000000e+00> : vector<16xf32>
    %196 = vector.multi_reduction <add>, %195, %cst_94 [1] : vector<16x128xf32> to vector<16xf32>
    %197 = vector.shape_cast %196 : vector<16xf32> to vector<16x1xf32>
    %cst_95 = arith.constant 1.250000e-02 : f32
    %198 = vector.broadcast %cst_95 : f32 to vector<16x1xf32>
    %199 = arith.mulf %197, %198 : vector<16x1xf32>
    %200 = arith.mulf %194, %194 : vector<16x1xf32>
    %201 = arith.subf %199, %200 : vector<16x1xf32>
    %202 = vector.broadcast %194 : vector<16x1xf32> to vector<16x128xf32>
    %203 = arith.subf %190, %202 : vector<16x128xf32>
    %cst_96 = arith.constant 9.99999974E-6 : f32
    %204 = vector.broadcast %cst_96 : f32 to vector<16x1xf32>
    %205 = arith.addf %201, %204 : vector<16x1xf32>
    %206 = math.rsqrt %205 : vector<16x1xf32>
    %207 = vector.broadcast %206 : vector<16x1xf32> to vector<16x128xf32>
    %208 = arith.mulf %203, %207 : vector<16x128xf32>
    %c5_97 = arith.constant 5 : index
    %c0_98 = arith.constant 0 : index
    %c0_99 = arith.constant 0 : index
    %209 = vector.load %arg4[%c5_97, %c0_98, %c0_99] : memref<6x1x128xf32, #tpu.memory_space<vmem>>, vector<1x1x128xf32>
    %210 = vector.shape_cast %209 : vector<1x1x128xf32> to vector<1x128xf32>
    %211 = vector.broadcast %210 : vector<1x128xf32> to vector<16x128xf32>
    %212 = arith.mulf %208, %211 : vector<16x128xf32>
    %c5_100 = arith.constant 5 : index
    %c0_101 = arith.constant 0 : index
    %c0_102 = arith.constant 0 : index
    %213 = vector.load %arg5[%c5_100, %c0_101, %c0_102] : memref<6x1x128xf32, #tpu.memory_space<vmem>>, vector<1x1x128xf32>
    %214 = vector.shape_cast %213 : vector<1x1x128xf32> to vector<1x128xf32>
    %215 = vector.broadcast %214 : vector<1x128xf32> to vector<16x128xf32>
    %216 = arith.addf %212, %215 : vector<16x128xf32>
    %217 = arith.truncf %216 : vector<16x128xf32> to vector<16x128xbf16>
    %c0_103 = arith.constant 0 : index
    %c0_104 = arith.constant 0 : index
    %218 = vector.load %arg6[%c0_103, %c0_104] : memref<128x128xbf16, #tpu.memory_space<vmem>>, vector<128x128xbf16>
    %cst_105 = arith.constant dense<0.000000e+00> : vector<16x128xf32>
    %219 = tpu.matmul %217, %218, %cst_105 {dimension_numbers = #tpu.dot_dimension_numbers<[1], [0], [0], [1], [0, 0, 1, 1], [], []>} : vector<16x128xbf16>, vector<128x128xbf16>, vector<16x128xf32> -> vector<16x128xf32>
    %c0_106 = arith.constant 0 : index
    %c0_107 = arith.constant 0 : index
    %220 = vector.load %arg7[%c0_106, %c0_107] : memref<1x128xf32, #tpu.memory_space<vmem>>, vector<1x128xf32>
    %221 = vector.broadcast %220 : vector<1x128xf32> to vector<16x128xf32>
    %222 = arith.addf %219, %221 : vector<16x128xf32>
    %cst_108 = arith.constant 0.000000e+00 : f32
    %223 = vector.broadcast %cst_108 : f32 to vector<16x128xf32>
    %224 = arith.maximumf %222, %223 : vector<16x128xf32>
    %225 = arith.truncf %224 : vector<16x128xf32> to vector<16x128xbf16>
    %c0_109 = arith.constant 0 : index
    %c0_110 = arith.constant 0 : index
    %226 = vector.load %arg8[%c0_109, %c0_110] : memref<128x128xbf16, #tpu.memory_space<vmem>>, vector<128x128xbf16>
    %cst_111 = arith.constant dense<0.000000e+00> : vector<16x128xf32>
    %227 = tpu.matmul %225, %226, %cst_111 {dimension_numbers = #tpu.dot_dimension_numbers<[1], [0], [0], [1], [0, 0, 1, 1], [], []>} : vector<16x128xbf16>, vector<128x128xbf16>, vector<16x128xf32> -> vector<16x128xf32>
    %c0_112 = arith.constant 0 : index
    %c0_113 = arith.constant 0 : index
    %228 = vector.load %arg9[%c0_112, %c0_113] : memref<1x128xf32, #tpu.memory_space<vmem>>, vector<1x128xf32>
    %229 = vector.broadcast %228 : vector<1x128xf32> to vector<16x128xf32>
    %230 = arith.addf %227, %229 : vector<16x128xf32>
    %cst_114 = arith.constant 0.000000e+00 : f32
    %231 = vector.broadcast %cst_114 : f32 to vector<16x128xf32>
    %232 = arith.maximumf %230, %231 : vector<16x128xf32>
    %233 = arith.truncf %232 : vector<16x128xf32> to vector<16x128xbf16>
    %c0_115 = arith.constant 0 : index
    %c0_116 = arith.constant 0 : index
    %234 = vector.load %arg10[%c0_115, %c0_116] : memref<1x128xbf16, #tpu.memory_space<vmem>>, vector<1x128xbf16>
    %cst_117 = arith.constant dense<0.000000e+00> : vector<1x16xf32>
    %235 = tpu.matmul %234, %233, %cst_117 {dimension_numbers = #tpu.dot_dimension_numbers<[1], [1], [0], [0], [0, 0, 1, 0], [], []>} : vector<1x128xbf16>, vector<16x128xbf16>, vector<1x16xf32> -> vector<1x16xf32>
    %c0_118 = arith.constant 0 : index
    %c0_119 = arith.constant 0 : index
    %236 = vector.load %arg11[%c0_118, %c0_119] : memref<1x1xf32, #tpu.memory_space<vmem>>, vector<1x1xf32>
    %237 = vector.broadcast %236 : vector<1x1xf32> to vector<1x16xf32>
    %238 = arith.addf %235, %237 : vector<1x16xf32>
    %c0_120 = arith.constant 0 : index
    %c0_121 = arith.constant 0 : index
    %239 = vector.load %arg12[%c0_120, %c0_121] : memref<1x16xf32, #tpu.memory_space<vmem>>, vector<1x16xf32>
    tpu.vector_store %arg12[%c0_120, %c0_121], %238 {strides = array<i32>} : memref<1x16xf32, #tpu.memory_space<vmem>>, vector<1x16xf32>,
    return
  }
  func.func @transform_0(%arg0: i32) -> (i32, i32) {
    %c0_i32 = arith.constant 0 : i32
    %c0_i32_0 = arith.constant 0 : i32
    return %arg0, %c0_i32 : i32, i32
  }
  func.func @transform_1(%arg0: i32) -> (i32, i32, i32) {
    %c0_i32 = arith.constant 0 : i32
    %c0_i32_0 = arith.constant 0 : i32
    %c0_i32_1 = arith.constant 0 : i32
    %c0_i32_2 = arith.constant 0 : i32
    return %c0_i32, %c0_i32_0, %c0_i32_1 : i32, i32, i32
  }
  func.func @transform_2(%arg0: i32) -> (i32, i32, i32) {
    %c0_i32 = arith.constant 0 : i32
    %c0_i32_0 = arith.constant 0 : i32
    %c0_i32_1 = arith.constant 0 : i32
    %c0_i32_2 = arith.constant 0 : i32
    return %c0_i32, %c0_i32_0, %c0_i32_1 : i32, i32, i32
  }
  func.func @transform_3(%arg0: i32) -> (i32, i32, i32) {
    %c0_i32 = arith.constant 0 : i32
    %c0_i32_0 = arith.constant 0 : i32
    %c0_i32_1 = arith.constant 0 : i32
    %c0_i32_2 = arith.constant 0 : i32
    return %c0_i32, %c0_i32_0, %c0_i32_1 : i32, i32, i32
  }
  func.func @transform_4(%arg0: i32) -> (i32, i32, i32) {
    %c0_i32 = arith.constant 0 : i32
    %c0_i32_0 = arith.constant 0 : i32
    %c0_i32_1 = arith.constant 0 : i32
    %c0_i32_2 = arith.constant 0 : i32
    return %c0_i32, %c0_i32_0, %c0_i32_1 : i32, i32, i32
  }
  func.func @transform_5(%arg0: i32) -> (i32, i32) {
    %c0_i32 = arith.constant 0 : i32
    %c0_i32_0 = arith.constant 0 : i32
    %c0_i32_1 = arith.constant 0 : i32
    return %c0_i32, %c0_i32_0 : i32, i32
  }
  func.func @transform_6(%arg0: i32) -> (i32, i32) {
    %c0_i32 = arith.constant 0 : i32
    %c0_i32_0 = arith.constant 0 : i32
    %c0_i32_1 = arith.constant 0 : i32
    return %c0_i32, %c0_i32_0 : i32, i32
  }
  func.func @transform_7(%arg0: i32) -> (i32, i32) {
    %c0_i32 = arith.constant 0 : i32
    %c0_i32_0 = arith.constant 0 : i32
    %c0_i32_1 = arith.constant 0 : i32
    return %c0_i32, %c0_i32_0 : i32, i32
  }
  func.func @transform_8(%arg0: i32) -> (i32, i32) {
    %c0_i32 = arith.constant 0 : i32
    %c0_i32_0 = arith.constant 0 : i32
    %c0_i32_1 = arith.constant 0 : i32
    return %c0_i32, %c0_i32_0 : i32, i32
  }
  func.func @transform_9(%arg0: i32) -> (i32, i32) {
    %c0_i32 = arith.constant 0 : i32
    %c0_i32_0 = arith.constant 0 : i32
    %c0_i32_1 = arith.constant 0 : i32
    return %c0_i32, %c0_i32_0 : i32, i32
  }
  func.func @transform_10(%arg0: i32) -> (i32, i32) {
    %c0_i32 = arith.constant 0 : i32
    %c0_i32_0 = arith.constant 0 : i32
    %c0_i32_1 = arith.constant 0 : i32
    return %c0_i32, %c0_i32_0 : i32, i32
  }
  func.func @transform_11(%arg0: i32) -> (i32, i32) {
    %c0_i32 = arith.constant 0 : i32
    %c0_i32_0 = arith.constant 0 : i32
    return %c0_i32, %arg0 : i32, i32
  }
}

</mosaic_0001>

<llo_original>
// kernel: dcnv2_forward.1
$region0: #{dcnv2_forward.1}
  #allocation0 [shape = 'u32[]', space=smem, size = 0x4, offset = 0x4, fixed_abs, tag = 'smem constant byte address 0x4 - core index']
  #allocation1 [shape = 'u32[144,128]{1,0:T(1,128)}', space=vmem, size = 0x12000, scoped, tag = 'internal scratch']
  #allocation2 [shape = 'f32[1,1]{1,0:T(1,128)S(1)}', space=vmem, size = 0x200, scoped, tag = 'scoped memory for dcnv2_forward.1']
  %s0 = inlined_call_operand.vmem [shape: bf16[16,128], index: 0, kind: input, shape index: {}]
  %s1 = inlined_call_operand.vmem [shape: bf16[6,128,128], index: 1, kind: input, shape index: {}]
  %s2 = inlined_call_operand.vmem [shape: f32[6,1,128], index: 2, kind: input, shape index: {}]
  %s3 = inlined_call_operand.vmem [shape: f32[6,1,128], index: 3, kind: input, shape index: {}]
  %s4 = inlined_call_operand.vmem [shape: f32[6,1,128], index: 4, kind: input, shape index: {}]
  %s5 = inlined_call_operand.vmem [shape: bf16[128,128], index: 5, kind: input, shape index: {}]
  %s6 = inlined_call_operand.vmem [shape: f32[1,128], index: 6, kind: input, shape index: {}]
  %s7 = inlined_call_operand.vmem [shape: bf16[128,128], index: 7, kind: input, shape index: {}]
  %s8 = inlined_call_operand.vmem [shape: f32[1,128], index: 8, kind: input, shape index: {}]
  %s9 = inlined_call_operand.vmem [shape: bf16[1,128], index: 9, kind: input, shape index: {}]
  %s10 = inlined_call_operand.<no memory space> [shape: f32[1,1], index: 10, kind: input, shape index: {}]
  %s11 = inlined_call_operand.hbm [shape: f32[1,16], index: 11, kind: output, shape index: {}]
  %s12 = sld [smem:[#allocation0]]
  $region54: #{dcnv2_forward.1} parent=0
    _
  %s14 = ssub.s32 1, %s12
  %s15 = scalar_select 0, %s14, %s12
  %v16 = vstv %s10
  %17 = vst [vmem:[#allocation2] sm:$0x1] %v16
  $region1: #{dcnv2_forward.1} parent=0
    #allocation3 [shape = 'u8[512]{0}', space=vmem, size = 0x400, scoped, tag = 'output window, operand 0, single buffered']
    #allocation4 [shape = 's32[1]{0}', space=sflag, size = 0x4, scoped, tag = 'scoped memory for dcnv2_forward.1']
    %18 = vsyncpa [#allocation4], 0
    // Predicated region
    $region2: #{dcnv2_forward.1} parent=1 // pred_check
      _
    $region3: #{dcnv2_forward.1} parent=1 // pred_check_branch
      %20 = sbr.rel (0) target = $region5
    $region4: #{dcnv2_forward.1} parent=1 // pred_region
      _
    $region5: #{dcnv2_forward.1} parent=1 // pred_fallthru
      _
    // Predicated region
    $region6: #{dcnv2_forward.1} parent=1 // pred_check
      _
    $region7: #{dcnv2_forward.1} parent=1 // pred_check_branch
      %22 = sbr.rel (0) target = $region9
    $region8: #{dcnv2_forward.1} parent=1 // pred_region
      _
    $region9: #{dcnv2_forward.1} parent=1 // pred_fallthru
      _
    // Predicated region
    $region10: #{dcnv2_forward.1} parent=1 // pred_check
      _
    $region11: #{dcnv2_forward.1} parent=1 // pred_check_branch
      %24 = sbr.rel (0) target = $region13
    $region12: #{dcnv2_forward.1} parent=1 // pred_region
      _
    $region13: #{dcnv2_forward.1} parent=1 // pred_fallthru
      _
    // Predicated region
    $region14: #{dcnv2_forward.1} parent=1 // pred_check
      _
    $region15: #{dcnv2_forward.1} parent=1 // pred_check_branch
      %26 = sbr.rel (0) target = $region17
    $region16: #{dcnv2_forward.1} parent=1 // pred_region
      _
    $region17: #{dcnv2_forward.1} parent=1 // pred_fallthru
      _
    // Predicated region
    $region18: #{dcnv2_forward.1} parent=1 // pred_check
      _
    $region19: #{dcnv2_forward.1} parent=1 // pred_check_branch
      %28 = sbr.rel (0) target = $region21
    $region20: #{dcnv2_forward.1} parent=1 // pred_region
      _
    $region21: #{dcnv2_forward.1} parent=1 // pred_fallthru
      _
    // Predicated region
    $region22: #{dcnv2_forward.1} parent=1 // pred_check
      _
    $region23: #{dcnv2_forward.1} parent=1 // pred_check_branch
      %30 = sbr.rel (0) target = $region25
    $region24: #{dcnv2_forward.1} parent=1 // pred_region
      _
    $region25: #{dcnv2_forward.1} parent=1 // pred_fallthru
      _
    // Predicated region
    $region26: #{dcnv2_forward.1} parent=1 // pred_check
      _
    $region27: #{dcnv2_forward.1} parent=1 // pred_check_branch
      %32 = sbr.rel (0) target = $region29
    $region28: #{dcnv2_forward.1} parent=1 // pred_region
      _
    $region29: #{dcnv2_forward.1} parent=1 // pred_fallthru
      _
    // Predicated region
    $region30: #{dcnv2_forward.1} parent=1 // pred_check
      _
    $region31: #{dcnv2_forward.1} parent=1 // pred_check_branch
      %34 = sbr.rel (0) target = $region33
    $region32: #{dcnv2_forward.1} parent=1 // pred_region
      _
    $region33: #{dcnv2_forward.1} parent=1 // pred_fallthru
      _
    // Predicated region
    $region34: #{dcnv2_forward.1} parent=1 // pred_check
      _
    $region35: #{dcnv2_forward.1} parent=1 // pred_check_branch
      %36 = sbr.rel (0) target = $region37
    $region36: #{dcnv2_forward.1} parent=1 // pred_region
      _
    $region37: #{dcnv2_forward.1} parent=1 // pred_fallthru
      _
    // Predicated region
    $region38: #{dcnv2_forward.1} parent=1 // pred_check
      _
    $region39: #{dcnv2_forward.1} parent=1 // pred_check_branch
      %38 = sbr.rel (0) target = $region41
    $region40: #{dcnv2_forward.1} parent=1 // pred_region
      _
    $region41: #{dcnv2_forward.1} parent=1 // pred_fallthru
      _
    // Predicated region
    $region42: #{dcnv2_forward.1} parent=1 // pred_check
      _
    $region43: #{dcnv2_forward.1} parent=1 // pred_check_branch
      %40 = sbr.rel (0) target = $region45
    $region44: #{dcnv2_forward.1} parent=1 // pred_region
      _
    $region45: #{dcnv2_forward.1} parent=1 // pred_fallthru
      _
    %v42 = vld [vmem:[%s0] sm:$0xf]
    %v43 = vld [vmem:[%s0 + $0x4] sm:$0xf]
    %v44 = vunpack.c.l.bf16 %v42
    %v45 = vunpack.c.l.bf16 %v43
    %v46 = vld [vmem:[%s1] sm:$0xf]
    %v47 = vld [vmem:[%s1 + $0x4] sm:$0xf]
    %v48 = vld [vmem:[%s1 + $0x8] sm:$0xf]
    %v49 = vld [vmem:[%s1 + $0xc] sm:$0xf]
    %v50 = vld [vmem:[%s1 + $0x10] sm:$0xf]
    %v51 = vld [vmem:[%s1 + $0x14] sm:$0xf]
    %v52 = vld [vmem:[%s1 + $0x18] sm:$0xf]
    %v53 = vld [vmem:[%s1 + $0x1c] sm:$0xf]
    %v54 = vld [vmem:[%s1 + $0x20] sm:$0xf]
    %v55 = vld [vmem:[%s1 + $0x24] sm:$0xf]
    %v56 = vld [vmem:[%s1 + $0x28] sm:$0xf]
    %v57 = vld [vmem:[%s1 + $0x2c] sm:$0xf]
    %v58 = vld [vmem:[%s1 + $0x30] sm:$0xf]
    %v59 = vld [vmem:[%s1 + $0x34] sm:$0xf]
    %v60 = vld [vmem:[%s1 + $0x38] sm:$0xf]
    %v61 = vld [vmem:[%s1 + $0x3c] sm:$0xf]
    %v62 = vld [vmem:[%s2] sm:$0x1]
    %v64 = vlaneseq
    %v65 = vshrl.u32 %v64, 7
    %v66 = vsub.s32 0, %v65
    %v67 = vrot.slane %v62, %v66
    %v71 = vunpack.c.l.b16 %v42
    %v72 = vunpack.c.l.b16 %v43
    %v73 = vpack.c.b16 %v72, %v71
    %v91 = vunpack.c.l.b16 %v46
    %v92 = vunpack.c.l.b16 %v47
    %v93 = vunpack.c.l.b16 %v48
    %v94 = vunpack.c.l.b16 %v49
    %v95 = vunpack.c.l.b16 %v50
    %v96 = vunpack.c.l.b16 %v51
    %v97 = vunpack.c.l.b16 %v52
    %v98 = vunpack.c.l.b16 %v53
    %v99 = vunpack.c.l.b16 %v54
    %v100 = vunpack.c.l.b16 %v55
    %v101 = vunpack.c.l.b16 %v56
    %v102 = vunpack.c.l.b16 %v57
    %v103 = vunpack.c.l.b16 %v58
    %v104 = vunpack.c.l.b16 %v59
    %v105 = vunpack.c.l.b16 %v60
    %v106 = vunpack.c.l.b16 %v61
    %v107 = vpack.c.b16 %v92, %v91
    %v108 = vpack.c.b16 %v94, %v93
    %v109 = vpack.c.b16 %v96, %v95
    %v110 = vpack.c.b16 %v98, %v97
    %v111 = vpack.c.b16 %v100, %v99
    %v112 = vpack.c.b16 %v102, %v101
    %v113 = vpack.c.b16 %v104, %v103
    %v114 = vpack.c.b16 %v106, %v105
    %123 = vmatprep.subr.bf16.mxu0 0
    %124 = vmatpush1.bf16.msra.mxu0 %v107
    %125 = vmatprep.subr.bf16.mxu0 0
    %126 = vmatpush1.bf16.msra.mxu0 %v108
    %127 = vmatprep.subr.bf16.mxu0 0
    %128 = vmatpush1.bf16.msra.mxu0 %v109
    %129 = vmatprep.subr.bf16.mxu0 0
    %130 = vmatpush1.bf16.msra.mxu0 %v110
    %131 = vmatprep.subr.bf16.mxu0 0
    %132 = vmatpush1.bf16.msra.mxu0 %v111
    %133 = vmatprep.subr.bf16.mxu0 0
    %134 = vmatpush1.bf16.msra.mxu0 %v112
    %135 = vmatprep.subr.bf16.mxu0 0
    %136 = vmatpush1.bf16.msra.mxu0 %v113
    %137 = vmatprep.subr.bf16.mxu0 0
    %138 = vmatpush1.bf16.msra.mxu0 %v114
    %139 = vmatprep.subr.bf16.mxu0 0
    %140 = vmatpush1.bf16.msra.mxu0 0
    %141 = vmatprep.subr.bf16.mxu0 0
    %142 = vmatpush1.bf16.msra.mxu0 0
    %143 = vmatprep.subr.bf16.mxu0 0
    %144 = vmatpush1.bf16.msra.mxu0 0
    %145 = vmatprep.subr.bf16.mxu0 0
    %146 = vmatpush1.bf16.msra.mxu0 0
    %147 = vmatprep.subr.bf16.mxu0 0
    %148 = vmatpush1.bf16.msra.mxu0 0
    %149 = vmatprep.subr.bf16.mxu0 0
    %150 = vmatpush1.bf16.msra.mxu0 0
    %151 = vmatprep.subr.bf16.mxu0 0
    %152 = vmatpush1.bf16.msra.mxu0 0
    %153 = vmatprep.subr.bf16.mxu0 0
    %154 = vmatpush1.bf16.msra.mxu0 0
    %155 = vmatprep.mubr.bf16.mxu0 0
    %156 = vmatmul.mubr.bf16.gmra.mrb[0].mxu0 %v73
    %v157 = vpop.f32.mrb[0].mxu0
    %v158 = vadd.f32 %v67, %v157
    %v159 = vpop.f32.mrb[0].mxu0
    %v160 = vpop.f32.mrb[0].mxu0
    %v161 = vadd.f32 %v67, %v160
    %v162 = vpop.f32.mrb[0].mxu0
    %163 = vdwg.mxu0
    %v164 = vmul.f32 %v44, %v158
    %v165 = vmul.f32 %v45, %v161
    %v166 = vadd.f32 %v164, %v44
    %v167 = vadd.f32 %v165, %v45
    %168 = vadd.xlane.f32.xlu0 %v166
    %v169 = vpop.xlane.xlu0 %168
    %170 = vadd.xlane.f32.xlu0 %v167
    %v171 = vpop.xlane.xlu0 %170
    %v172 = vmul.f32 %v169, 0.0125
    %v173 = vmul.f32 %v171, 0.0125
    %v174 = vmul.f32 %v166, %v166
    %v175 = vmul.f32 %v167, %v167
    %176 = vadd.xlane.f32.xlu0 %v174
    %v177 = vpop.xlane.xlu0 %176
    %178 = vadd.xlane.f32.xlu0 %v175
    %v179 = vpop.xlane.xlu0 %178
    %v180 = vmul.f32 %v177, 0.0125
    %v181 = vmul.f32 %v179, 0.0125
    %v182 = vmul.f32 %v172, %v172
    %v183 = vmul.f32 %v173, %v173
    %v184 = vsub.f32 %v180, %v182
    %v185 = vsub.f32 %v181, %v183
    %v186 = vsub.f32 %v166, %v172
    %v187 = vsub.f32 %v167, %v173
    %v188 = vadd.f32 %v184, 1e-05
    %v189 = vadd.f32 %v185, 1e-05
    %v190 = vrsqrt.pop %v188
    %v191 = vrsqrt.pop %v189
    %v192 = vmul.f32 %v186, %v190
    %v193 = vmul.f32 %v187, %v191
    %v194 = vld [vmem:[%s3] sm:$0x1]
    %v196 = vlaneseq
    %v197 = vshrl.u32 %v196, 7
    %v198 = vsub.s32 0, %v197
    %v199 = vrot.slane %v194, %v198
    %v201 = vmul.f32 %v192, %v199
    %v202 = vmul.f32 %v193, %v199
    %v203 = vld [vmem:[%s4] sm:$0x1]
    %v205 = vlaneseq
    %v206 = vshrl.u32 %v205, 7
    %v207 = vsub.s32 0, %v206
    %v208 = vrot.slane %v203, %v207
    %v210 = vadd.f32 %v201, %v208
    %v211 = vadd.f32 %v202, %v208
    %v212 = vpack.c.bf16 %v211, %v210
    %s213 = scalar_lea.vmem %s1, 64
    %v214 = vld [vmem:[%s213] sm:$0xf]
    %v215 = vld [vmem:[%s213 + $0x4] sm:$0xf]
    %v216 = vld [vmem:[%s213 + $0x8] sm:$0xf]
    %v217 = vld [vmem:[%s213 + $0xc] sm:$0xf]
    %v218 = vld [vmem:[%s213 + $0x10] sm:$0xf]
    %v219 = vld [vmem:[%s213 + $0x14] sm:$0xf]
    %v220 = vld [vmem:[%s213 + $0x18] sm:$0xf]
    %v221 = vld [vmem:[%s213 + $0x1c] sm:$0xf]
    %v222 = vld [vmem:[%s213 + $0x20] sm:$0xf]
    %v223 = vld [vmem:[%s213 + $0x24] sm:$0xf]
    %v224 = vld [vmem:[%s213 + $0x28] sm:$0xf]
    %v225 = vld [vmem:[%s213 + $0x2c] sm:$0xf]
    %v226 = vld [vmem:[%s213 + $0x30] sm:$0xf]
    %v227 = vld [vmem:[%s213 + $0x34] sm:$0xf]
    %v228 = vld [vmem:[%s213 + $0x38] sm:$0xf]
    %v229 = vld [vmem:[%s213 + $0x3c] sm:$0xf]
    %s230 = scalar_lea.vmem %s2, 1
    %v231 = vld [vmem:[%s230] sm:$0x1]
    %v233 = vlaneseq
    %v234 = vshrl.u32 %v233, 7
    %v235 = vsub.s32 0, %v234
    %v236 = vrot.slane %v231, %v235
    %v254 = vunpack.c.l.b16 %v214
    %v255 = vunpack.c.l.b16 %v215
    %v256 = vunpack.c.l.b16 %v216
    %v257 = vunpack.c.l.b16 %v217
    %v258 = vunpack.c.l.b16 %v218
    %v259 = vunpack.c.l.b16 %v219
    %v260 = vunpack.c.l.b16 %v220
    %v261 = vunpack.c.l.b16 %v221
    %v262 = vunpack.c.l.b16 %v222
    %v263 = vunpack.c.l.b16 %v223
    %v264 = vunpack.c.l.b16 %v224
    %v265 = vunpack.c.l.b16 %v225
    %v266 = vunpack.c.l.b16 %v226
    %v267 = vunpack.c.l.b16 %v227
    %v268 = vunpack.c.l.b16 %v228
    %v269 = vunpack.c.l.b16 %v229
    %v270 = vpack.c.b16 %v255, %v254
    %v271 = vpack.c.b16 %v257, %v256
    %v272 = vpack.c.b16 %v259, %v258
    %v273 = vpack.c.b16 %v261, %v260
    %v274 = vpack.c.b16 %v263, %v262
    %v275 = vpack.c.b16 %v265, %v264
    %v276 = vpack.c.b16 %v267, %v266
    %v277 = vpack.c.b16 %v269, %v268
    %286 = vmatprep.subr.bf16.mxu0 0
    %287 = vmatpush1.bf16.msra.mxu0 %v270
    %288 = vmatprep.subr.bf16.mxu0 0
    %289 = vmatpush1.bf16.msra.mxu0 %v271
    %290 = vmatprep.subr.bf16.mxu0 0
    %291 = vmatpush1.bf16.msra.mxu0 %v272
    %292 = vmatprep.subr.bf16.mxu0 0
    %293 = vmatpush1.bf16.msra.mxu0 %v273
    %294 = vmatprep.subr.bf16.mxu0 0
    %295 = vmatpush1.bf16.msra.mxu0 %v274
    %296 = vmatprep.subr.bf16.mxu0 0
    %297 = vmatpush1.bf16.msra.mxu0 %v275
    %298 = vmatprep.subr.bf16.mxu0 0
    %299 = vmatpush1.bf16.msra.mxu0 %v276
    %300 = vmatprep.subr.bf16.mxu0 0
    %301 = vmatpush1.bf16.msra.mxu0 %v277
    %302 = vmatprep.subr.bf16.mxu0 0
    %303 = vmatpush1.bf16.msra.mxu0 0
    %304 = vmatprep.subr.bf16.mxu0 0
    %305 = vmatpush1.bf16.msra.mxu0 0
    %306 = vmatprep.subr.bf16.mxu0 0
    %307 = vmatpush1.bf16.msra.mxu0 0
    %308 = vmatprep.subr.bf16.mxu0 0
    %309 = vmatpush1.bf16.msra.mxu0 0
    %310 = vmatprep.subr.bf16.mxu0 0
    %311 = vmatpush1.bf16.msra.mxu0 0
    %312 = vmatprep.subr.bf16.mxu0 0
    %313 = vmatpush1.bf16.msra.mxu0 0
    %314 = vmatprep.subr.bf16.mxu0 0
    %315 = vmatpush1.bf16.msra.mxu0 0
    %316 = vmatprep.subr.bf16.mxu0 0
    %317 = vmatpush1.bf16.msra.mxu0 0
    %318 = vmatprep.mubr.bf16.mxu0 0
    %319 = vmatmul.mubr.bf16.gmra.mrb[0].mxu0 %v212
    %v320 = vpop.f32.mrb[0].mxu0
    %v321 = vadd.f32 %v236, %v320
    %v322 = vpop.f32.mrb[0].mxu0
    %v323 = vpop.f32.mrb[0].mxu0
    %v324 = vadd.f32 %v236, %v323
    %v325 = vpop.f32.mrb[0].mxu0
    %326 = vdwg.mxu0
    %v327 = vmul.f32 %v44, %v321
    %v328 = vmul.f32 %v45, %v324
    %v329 = vadd.f32 %v327, %v210
    %v330 = vadd.f32 %v328, %v211
    %331 = vadd.xlane.f32.xlu0 %v329
    %v332 = vpop.xlane.xlu0 %331
    %333 = vadd.xlane.f32.xlu0 %v330
    %v334 = vpop.xlane.xlu0 %333
    %v335 = vmul.f32 %v332, 0.0125
    %v336 = vmul.f32 %v334, 0.0125
    %v337 = vmul.f32 %v329, %v329
    %v338 = vmul.f32 %v330, %v330
    %339 = vadd.xlane.f32.xlu0 %v337
    %v340 = vpop.xlane.xlu0 %339
    %341 = vadd.xlane.f32.xlu0 %v338
    %v342 = vpop.xlane.xlu0 %341
    %v343 = vmul.f32 %v340, 0.0125
    %v344 = vmul.f32 %v342, 0.0125
    %v345 = vmul.f32 %v335, %v335
    %v346 = vmul.f32 %v336, %v336
    %v347 = vsub.f32 %v343, %v345
    %v348 = vsub.f32 %v344, %v346
    %v349 = vsub.f32 %v329, %v335
    %v350 = vsub.f32 %v330, %v336
    %v351 = vadd.f32 %v347, 1e-05
    %v352 = vadd.f32 %v348, 1e-05
    %v353 = vrsqrt.pop %v351
    %v354 = vrsqrt.pop %v352
    %v355 = vmul.f32 %v349, %v353
    %v356 = vmul.f32 %v350, %v354
    %s357 = scalar_lea.vmem %s3, 1
    %v358 = vld [vmem:[%s357] sm:$0x1]
    %v360 = vlaneseq
    %v361 = vshrl.u32 %v360, 7
    %v362 = vsub.s32 0, %v361
    %v363 = vrot.slane %v358, %v362
    %v365 = vmul.f32 %v355, %v363
    %v366 = vmul.f32 %v356, %v363
    %s367 = scalar_lea.vmem %s4, 1
    %v368 = vld [vmem:[%s367] sm:$0x1]
    %v370 = vlaneseq
    %v371 = vshrl.u32 %v370, 7
    %v372 = vsub.s32 0, %v371
    %v373 = vrot.slane %v368, %v372
    %v375 = vadd.f32 %v365, %v373
    %v376 = vadd.f32 %v366, %v373
    %v377 = vpack.c.bf16 %v376, %v375
    %s378 = scalar_lea.vmem %s1, 128
    %v379 = vld [vmem:[%s378] sm:$0xf]
    %v380 = vld [vmem:[%s378 + $0x4] sm:$0xf]
    %v381 = vld [vmem:[%s378 + $0x8] sm:$0xf]
    %v382 = vld [vmem:[%s378 + $0xc] sm:$0xf]
    %v383 = vld [vmem:[%s378 + $0x10] sm:$0xf]
    %v384 = vld [vmem:[%s378 + $0x14] sm:$0xf]
    %v385 = vld [vmem:[%s378 + $0x18] sm:$0xf]
    %v386 = vld [vmem:[%s378 + $0x1c] sm:$0xf]
    %v387 = vld [vmem:[%s378 + $0x20] sm:$0xf]
    %v388 = vld [vmem:[%s378 + $0x24] sm:$0xf]
    %v389 = vld [vmem:[%s378 + $0x28] sm:$0xf]
    %v390 = vld [vmem:[%s378 + $0x2c] sm:$0xf]
    %v391 = vld [vmem:[%s378 + $0x30] sm:$0xf]
    %v392 = vld [vmem:[%s378 + $0x34] sm:$0xf]
    %v393 = vld [vmem:[%s378 + $0x38] sm:$0xf]
    %v394 = vld [vmem:[%s378 + $0x3c] sm:$0xf]
    %s395 = scalar_lea.vmem %s2, 2
    %v396 = vld [vmem:[%s395] sm:$0x1]
    %v398 = vlaneseq
    %v399 = vshrl.u32 %v398, 7
    %v400 = vsub.s32 0, %v399
    %v401 = vrot.slane %v396, %v400
    %v419 = vunpack.c.l.b16 %v379
    %v420 = vunpack.c.l.b16 %v380
    %v421 = vunpack.c.l.b16 %v381
    %v422 = vunpack.c.l.b16 %v382
    %v423 = vunpack.c.l.b16 %v383
    %v424 = vunpack.c.l.b16 %v384
    %v425 = vunpack.c.l.b16 %v385
    %v426 = vunpack.c.l.b16 %v386
    %v427 = vunpack.c.l.b16 %v387
    %v428 = vunpack.c.l.b16 %v388
    %v429 = vunpack.c.l.b16 %v389
    %v430 = vunpack.c.l.b16 %v390
    %v431 = vunpack.c.l.b16 %v391
    %v432 = vunpack.c.l.b16 %v392
    %v433 = vunpack.c.l.b16 %v393
    %v434 = vunpack.c.l.b16 %v394
    %v435 = vpack.c.b16 %v420, %v419
    %v436 = vpack.c.b16 %v422, %v421
    %v437 = vpack.c.b16 %v424, %v423
    %v438 = vpack.c.b16 %v426, %v425
    %v439 = vpack.c.b16 %v428, %v427
    %v440 = vpack.c.b16 %v430, %v429
    %v441 = vpack.c.b16 %v432, %v431
    %v442 = vpack.c.b16 %v434, %v433
    %451 = vmatprep.subr.bf16.mxu0 0
    %452 = vmatpush1.bf16.msra.mxu0 %v435
    %453 = vmatprep.subr.bf16.mxu0 0
    %454 = vmatpush1.bf16.msra.mxu0 %v436
    %455 = vmatprep.subr.bf16.mxu0 0
    %456 = vmatpush1.bf16.msra.mxu0 %v437
    %457 = vmatprep.subr.bf16.mxu0 0
    %458 = vmatpush1.bf16.msra.mxu0 %v438
    %459 = vmatprep.subr.bf16.mxu0 0
    %460 = vmatpush1.bf16.msra.mxu0 %v439
    %461 = vmatprep.subr.bf16.mxu0 0
    %462 = vmatpush1.bf16.msra.mxu0 %v440
    %463 = vmatprep.subr.bf16.mxu0 0
    %464 = vmatpush1.bf16.msra.mxu0 %v441
    %465 = vmatprep.subr.bf16.mxu0 0
    %466 = vmatpush1.bf16.msra.mxu0 %v442
    %467 = vmatprep.subr.bf16.mxu0 0
    %468 = vmatpush1.bf16.msra.mxu0 0
    %469 = vmatprep.subr.bf16.mxu0 0
    %470 = vmatpush1.bf16.msra.mxu0 0
    %471 = vmatprep.subr.bf16.mxu0 0
    %472 = vmatpush1.bf16.msra.mxu0 0
    %473 = vmatprep.subr.bf16.mxu0 0
    %474 = vmatpush1.bf16.msra.mxu0 0
    %475 = vmatprep.subr.bf16.mxu0 0
    %476 = vmatpush1.bf16.msra.mxu0 0
    %477 = vmatprep.subr.bf16.mxu0 0
    %478 = vmatpush1.bf16.msra.mxu0 0
    %479 = vmatprep.subr.bf16.mxu0 0
    %480 = vmatpush1.bf16.msra.mxu0 0
    %481 = vmatprep.subr.bf16.mxu0 0
    %482 = vmatpush1.bf16.msra.mxu0 0
    %483 = vmatprep.mubr.bf16.mxu0 0
    %484 = vmatmul.mubr.bf16.gmra.mrb[0].mxu0 %v377
    %v485 = vpop.f32.mrb[0].mxu0
    %v486 = vadd.f32 %v401, %v485
    %v487 = vpop.f32.mrb[0].mxu0
    %v488 = vpop.f32.mrb[0].mxu0
    %v489 = vadd.f32 %v401, %v488
    %v490 = vpop.f32.mrb[0].mxu0
    %491 = vdwg.mxu0
    %v492 = vmul.f32 %v44, %v486
    %v493 = vmul.f32 %v45, %v489
    %v494 = vadd.f32 %v492, %v375
    %v495 = vadd.f32 %v493, %v376
    %496 = vadd.xlane.f32.xlu0 %v494
    %v497 = vpop.xlane.xlu0 %496
    %498 = vadd.xlane.f32.xlu0 %v495
    %v499 = vpop.xlane.xlu0 %498
    %v500 = vmul.f32 %v497, 0.0125
    %v501 = vmul.f32 %v499, 0.0125
    %v502 = vmul.f32 %v494, %v494
    %v503 = vmul.f32 %v495, %v495
    %504 = vadd.xlane.f32.xlu0 %v502
    %v505 = vpop.xlane.xlu0 %504
    %506 = vadd.xlane.f32.xlu0 %v503
    %v507 = vpop.xlane.xlu0 %506
    %v508 = vmul.f32 %v505, 0.0125
    %v509 = vmul.f32 %v507, 0.0125
    %v510 = vmul.f32 %v500, %v500
    %v511 = vmul.f32 %v501, %v501
    %v512 = vsub.f32 %v508, %v510
    %v513 = vsub.f32 %v509, %v511
    %v514 = vsub.f32 %v494, %v500
    %v515 = vsub.f32 %v495, %v501
    %v516 = vadd.f32 %v512, 1e-05
    %v517 = vadd.f32 %v513, 1e-05
    %v518 = vrsqrt.pop %v516
    %v519 = vrsqrt.pop %v517
    %v520 = vmul.f32 %v514, %v518
    %v521 = vmul.f32 %v515, %v519
    %s522 = scalar_lea.vmem %s3, 2
    %v523 = vld [vmem:[%s522] sm:$0x1]
    %v525 = vlaneseq
    %v526 = vshrl.u32 %v525, 7
    %v527 = vsub.s32 0, %v526
    %v528 = vrot.slane %v523, %v527
    %v530 = vmul.f32 %v520, %v528
    %v531 = vmul.f32 %v521, %v528
    %s532 = scalar_lea.vmem %s4, 2
    %v533 = vld [vmem:[%s532] sm:$0x1]
    %v535 = vlaneseq
    %v536 = vshrl.u32 %v535, 7
    %v537 = vsub.s32 0, %v536
    %v538 = vrot.slane %v533, %v537
    %v540 = vadd.f32 %v530, %v538
    %v541 = vadd.f32 %v531, %v538
    %v542 = vpack.c.bf16 %v541, %v540
    %s543 = scalar_lea.vmem %s1, 192
    %v544 = vld [vmem:[%s543] sm:$0xf]
    %v545 = vld [vmem:[%s543 + $0x4] sm:$0xf]
    %v546 = vld [vmem:[%s543 + $0x8] sm:$0xf]
    %v547 = vld [vmem:[%s543 + $0xc] sm:$0xf]
    %v548 = vld [vmem:[%s543 + $0x10] sm:$0xf]
    %v549 = vld [vmem:[%s543 + $0x14] sm:$0xf]
    %v550 = vld [vmem:[%s543 + $0x18] sm:$0xf]
    %v551 = vld [vmem:[%s543 + $0x1c] sm:$0xf]
    %v552 = vld [vmem:[%s543 + $0x20] sm:$0xf]
    %v553 = vld [vmem:[%s543 + $0x24] sm:$0xf]
    %v554 = vld [vmem:[%s543 + $0x28] sm:$0xf]
    %v555 = vld [vmem:[%s543 + $0x2c] sm:$0xf]
    %v556 = vld [vmem:[%s543 + $0x30] sm:$0xf]
    %v557 = vld [vmem:[%s543 + $0x34] sm:$0xf]
    %v558 = vld [vmem:[%s543 + $0x38] sm:$0xf]
    %v559 = vld [vmem:[%s543 + $0x3c] sm:$0xf]
    %s560 = scalar_lea.vmem %s2, 3
    %v561 = vld [vmem:[%s560] sm:$0x1]
    %v563 = vlaneseq
    %v564 = vshrl.u32 %v563, 7
    %v565 = vsub.s32 0, %v564
    %v566 = vrot.slane %v561, %v565
    %v584 = vunpack.c.l.b16 %v544
    %v585 = vunpack.c.l.b16 %v545
    %v586 = vunpack.c.l.b16 %v546
    %v587 = vunpack.c.l.b16 %v547
    %v588 = vunpack.c.l.b16 %v548
    %v589 = vunpack.c.l.b16 %v549
    %v590 = vunpack.c.l.b16 %v550
    %v591 = vunpack.c.l.b16 %v551
    %v592 = vunpack.c.l.b16 %v552
    %v593 = vunpack.c.l.b16 %v553
    %v594 = vunpack.c.l.b16 %v554
    %v595 = vunpack.c.l.b16 %v555
    %v596 = vunpack.c.l.b16 %v556
    %v597 = vunpack.c.l.b16 %v557
    %v598 = vunpack.c.l.b16 %v558
    %v599 = vunpack.c.l.b16 %v559
    %v600 = vpack.c.b16 %v585, %v584
    %v601 = vpack.c.b16 %v587, %v586
    %v602 = vpack.c.b16 %v589, %v588
    %v603 = vpack.c.b16 %v591, %v590
    %v604 = vpack.c.b16 %v593, %v592
    %v605 = vpack.c.b16 %v595, %v594
    %v606 = vpack.c.b16 %v597, %v596
    %v607 = vpack.c.b16 %v599, %v598
    %616 = vmatprep.subr.bf16.mxu0 0
    %617 = vmatpush1.bf16.msra.mxu0 %v600
    %618 = vmatprep.subr.bf16.mxu0 0
    %619 = vmatpush1.bf16.msra.mxu0 %v601
    %620 = vmatprep.subr.bf16.mxu0 0
    %621 = vmatpush1.bf16.msra.mxu0 %v602
    %622 = vmatprep.subr.bf16.mxu0 0
    %623 = vmatpush1.bf16.msra.mxu0 %v603
    %624 = vmatprep.subr.bf16.mxu0 0
    %625 = vmatpush1.bf16.msra.mxu0 %v604
    %626 = vmatprep.subr.bf16.mxu0 0
    %627 = vmatpush1.bf16.msra.mxu0 %v605
    %628 = vmatprep.subr.bf16.mxu0 0
    %629 = vmatpush1.bf16.msra.mxu0 %v606
    %630 = vmatprep.subr.bf16.mxu0 0
    %631 = vmatpush1.bf16.msra.mxu0 %v607
    %632 = vmatprep.subr.bf16.mxu0 0
    %633 = vmatpush1.bf16.msra.mxu0 0
    %634 = vmatprep.subr.bf16.mxu0 0
    %635 = vmatpush1.bf16.msra.mxu0 0
    %636 = vmatprep.subr.bf16.mxu0 0
    %637 = vmatpush1.bf16.msra.mxu0 0
    %638 = vmatprep.subr.bf16.mxu0 0
    %639 = vmatpush1.bf16.msra.mxu0 0
    %640 = vmatprep.subr.bf16.mxu0 0
    %641 = vmatpush1.bf16.msra.mxu0 0
    %642 = vmatprep.subr.bf16.mxu0 0
    %643 = vmatpush1.bf16.msra.mxu0 0
    %644 = vmatprep.subr.bf16.mxu0 0
    %645 = vmatpush1.bf16.msra.mxu0 0
    %646 = vmatprep.subr.bf16.mxu0 0
    %647 = vmatpush1.bf16.msra.mxu0 0
    %648 = vmatprep.mubr.bf16.mxu0 0
    %649 = vmatmul.mubr.bf16.gmra.mrb[0].mxu0 %v542
    %v650 = vpop.f32.mrb[0].mxu0
    %v651 = vadd.f32 %v566, %v650
    %v652 = vpop.f32.mrb[0].mxu0
    %v653 = vpop.f32.mrb[0].mxu0
    %v654 = vadd.f32 %v566, %v653
    %v655 = vpop.f32.mrb[0].mxu0
    %656 = vdwg.mxu0
    %v657 = vmul.f32 %v44, %v651
    %v658 = vmul.f32 %v45, %v654
    %v659 = vadd.f32 %v657, %v540
    %v660 = vadd.f32 %v658, %v541
    %661 = vadd.xlane.f32.xlu0 %v659
    %v662 = vpop.xlane.xlu0 %661
    %663 = vadd.xlane.f32.xlu0 %v660
    %v664 = vpop.xlane.xlu0 %663
    %v665 = vmul.f32 %v662, 0.0125
    %v666 = vmul.f32 %v664, 0.0125
    %v667 = vmul.f32 %v659, %v659
    %v668 = vmul.f32 %v660, %v660
    %669 = vadd.xlane.f32.xlu0 %v667
    %v670 = vpop.xlane.xlu0 %669
    %671 = vadd.xlane.f32.xlu0 %v668
    %v672 = vpop.xlane.xlu0 %671
    %v673 = vmul.f32 %v670, 0.0125
    %v674 = vmul.f32 %v672, 0.0125
    %v675 = vmul.f32 %v665, %v665
    %v676 = vmul.f32 %v666, %v666
    %v677 = vsub.f32 %v673, %v675
    %v678 = vsub.f32 %v674, %v676
    %v679 = vsub.f32 %v659, %v665
    %v680 = vsub.f32 %v660, %v666
    %v681 = vadd.f32 %v677, 1e-05
    %v682 = vadd.f32 %v678, 1e-05
    %v683 = vrsqrt.pop %v681
    %v684 = vrsqrt.pop %v682
    %v685 = vmul.f32 %v679, %v683
    %v686 = vmul.f32 %v680, %v684
    %s687 = scalar_lea.vmem %s3, 3
    %v688 = vld [vmem:[%s687] sm:$0x1]
    %v690 = vlaneseq
    %v691 = vshrl.u32 %v690, 7
    %v692 = vsub.s32 0, %v691
    %v693 = vrot.slane %v688, %v692
    %v695 = vmul.f32 %v685, %v693
    %v696 = vmul.f32 %v686, %v693
    %s697 = scalar_lea.vmem %s4, 3
    %v698 = vld [vmem:[%s697] sm:$0x1]
    %v700 = vlaneseq
    %v701 = vshrl.u32 %v700, 7
    %v702 = vsub.s32 0, %v701
    %v703 = vrot.slane %v698, %v702
    %v705 = vadd.f32 %v695, %v703
    %v706 = vadd.f32 %v696, %v703
    %v707 = vpack.c.bf16 %v706, %v705
    %s708 = scalar_lea.vmem %s1, 256
    %v709 = vld [vmem:[%s708] sm:$0xf]
    %v710 = vld [vmem:[%s708 + $0x4] sm:$0xf]
    %v711 = vld [vmem:[%s708 + $0x8] sm:$0xf]
    %v712 = vld [vmem:[%s708 + $0xc] sm:$0xf]
    %v713 = vld [vmem:[%s708 + $0x10] sm:$0xf]
    %v714 = vld [vmem:[%s708 + $0x14] sm:$0xf]
    %v715 = vld [vmem:[%s708 + $0x18] sm:$0xf]
    %v716 = vld [vmem:[%s708 + $0x1c] sm:$0xf]
    %v717 = vld [vmem:[%s708 + $0x20] sm:$0xf]
    %v718 = vld [vmem:[%s708 + $0x24] sm:$0xf]
    %v719 = vld [vmem:[%s708 + $0x28] sm:$0xf]
    %v720 = vld [vmem:[%s708 + $0x2c] sm:$0xf]
    %v721 = vld [vmem:[%s708 + $0x30] sm:$0xf]
    %v722 = vld [vmem:[%s708 + $0x34] sm:$0xf]
    %v723 = vld [vmem:[%s708 + $0x38] sm:$0xf]
    %v724 = vld [vmem:[%s708 + $0x3c] sm:$0xf]
    %s725 = scalar_lea.vmem %s2, 4
    %v726 = vld [vmem:[%s725] sm:$0x1]
    %v728 = vlaneseq
    %v729 = vshrl.u32 %v728, 7
    %v730 = vsub.s32 0, %v729
    %v731 = vrot.slane %v726, %v730
    %v749 = vunpack.c.l.b16 %v709
    %v750 = vunpack.c.l.b16 %v710
    %v751 = vunpack.c.l.b16 %v711
    %v752 = vunpack.c.l.b16 %v712
    %v753 = vunpack.c.l.b16 %v713
    %v754 = vunpack.c.l.b16 %v714
    %v755 = vunpack.c.l.b16 %v715
    %v756 = vunpack.c.l.b16 %v716
    %v757 = vunpack.c.l.b16 %v717
    %v758 = vunpack.c.l.b16 %v718
    %v759 = vunpack.c.l.b16 %v719
    %v760 = vunpack.c.l.b16 %v720
    %v761 = vunpack.c.l.b16 %v721
    %v762 = vunpack.c.l.b16 %v722
    %v763 = vunpack.c.l.b16 %v723
    %v764 = vunpack.c.l.b16 %v724
    %v765 = vpack.c.b16 %v750, %v749
    %v766 = vpack.c.b16 %v752, %v751
    %v767 = vpack.c.b16 %v754, %v753
    %v768 = vpack.c.b16 %v756, %v755
    %v769 = vpack.c.b16 %v758, %v757
    %v770 = vpack.c.b16 %v760, %v759
    %v771 = vpack.c.b16 %v762, %v761
    %v772 = vpack.c.b16 %v764, %v763
    %781 = vmatprep.subr.bf16.mxu0 0
    %782 = vmatpush1.bf16.msra.mxu0 %v765
    %783 = vmatprep.subr.bf16.mxu0 0
    %784 = vmatpush1.bf16.msra.mxu0 %v766
    %785 = vmatprep.subr.bf16.mxu0 0
    %786 = vmatpush1.bf16.msra.mxu0 %v767
    %787 = vmatprep.subr.bf16.mxu0 0
    %788 = vmatpush1.bf16.msra.mxu0 %v768
    %789 = vmatprep.subr.bf16.mxu0 0
    %790 = vmatpush1.bf16.msra.mxu0 %v769
    %791 = vmatprep.subr.bf16.mxu0 0
    %792 = vmatpush1.bf16.msra.mxu0 %v770
    %793 = vmatprep.subr.bf16.mxu0 0
    %794 = vmatpush1.bf16.msra.mxu0 %v771
    %795 = vmatprep.subr.bf16.mxu0 0
    %796 = vmatpush1.bf16.msra.mxu0 %v772
    %797 = vmatprep.subr.bf16.mxu0 0
    %798 = vmatpush1.bf16.msra.mxu0 0
    %799 = vmatprep.subr.bf16.mxu0 0
    %800 = vmatpush1.bf16.msra.mxu0 0
    %801 = vmatprep.subr.bf16.mxu0 0
    %802 = vmatpush1.bf16.msra.mxu0 0
    %803 = vmatprep.subr.bf16.mxu0 0
    %804 = vmatpush1.bf16.msra.mxu0 0
    %805 = vmatprep.subr.bf16.mxu0 0
    %806 = vmatpush1.bf16.msra.mxu0 0
    %807 = vmatprep.subr.bf16.mxu0 0
    %808 = vmatpush1.bf16.msra.mxu0 0
    %809 = vmatprep.subr.bf16.mxu0 0
    %810 = vmatpush1.bf16.msra.mxu0 0
    %811 = vmatprep.subr.bf16.mxu0 0
    %812 = vmatpush1.bf16.msra.mxu0 0
    %813 = vmatprep.mubr.bf16.mxu0 0
    %814 = vmatmul.mubr.bf16.gmra.mrb[0].mxu0 %v707
    %v815 = vpop.f32.mrb[0].mxu0
    %v816 = vadd.f32 %v731, %v815
    %v817 = vpop.f32.mrb[0].mxu0
    %v818 = vpop.f32.mrb[0].mxu0
    %v819 = vadd.f32 %v731, %v818
    %v820 = vpop.f32.mrb[0].mxu0
    %821 = vdwg.mxu0
    %v822 = vmul.f32 %v44, %v816
    %v823 = vmul.f32 %v45, %v819
    %v824 = vadd.f32 %v822, %v705
    %v825 = vadd.f32 %v823, %v706
    %826 = vadd.xlane.f32.xlu0 %v824
    %v827 = vpop.xlane.xlu0 %826
    %828 = vadd.xlane.f32.xlu0 %v825
    %v829 = vpop.xlane.xlu0 %828
    %v830 = vmul.f32 %v827, 0.0125
    %v831 = vmul.f32 %v829, 0.0125
    %v832 = vmul.f32 %v824, %v824
    %v833 = vmul.f32 %v825, %v825
    %834 = vadd.xlane.f32.xlu0 %v832
    %v835 = vpop.xlane.xlu0 %834
    %836 = vadd.xlane.f32.xlu0 %v833
    %v837 = vpop.xlane.xlu0 %836
    %v838 = vmul.f32 %v835, 0.0125
    %v839 = vmul.f32 %v837, 0.0125
    %v840 = vmul.f32 %v830, %v830
    %v841 = vmul.f32 %v831, %v831
    %v842 = vsub.f32 %v838, %v840
    %v843 = vsub.f32 %v839, %v841
    %v844 = vsub.f32 %v824, %v830
    %v845 = vsub.f32 %v825, %v831
    %v846 = vadd.f32 %v842, 1e-05
    %v847 = vadd.f32 %v843, 1e-05
    %v848 = vrsqrt.pop %v846
    %v849 = vrsqrt.pop %v847
    %v850 = vmul.f32 %v844, %v848
    %v851 = vmul.f32 %v845, %v849
    %s852 = scalar_lea.vmem %s3, 4
    %v853 = vld [vmem:[%s852] sm:$0x1]
    %v855 = vlaneseq
    %v856 = vshrl.u32 %v855, 7
    %v857 = vsub.s32 0, %v856
    %v858 = vrot.slane %v853, %v857
    %v860 = vmul.f32 %v850, %v858
    %v861 = vmul.f32 %v851, %v858
    %s862 = scalar_lea.vmem %s4, 4
    %v863 = vld [vmem:[%s862] sm:$0x1]
    %v865 = vlaneseq
    %v866 = vshrl.u32 %v865, 7
    %v867 = vsub.s32 0, %v866
    %v868 = vrot.slane %v863, %v867
    %v870 = vadd.f32 %v860, %v868
    %v871 = vadd.f32 %v861, %v868
    %v872 = vpack.c.bf16 %v871, %v870
    %s873 = scalar_lea.vmem %s1, 320
    %v874 = vld [vmem:[%s873] sm:$0xf]
    %v875 = vld [vmem:[%s873 + $0x4] sm:$0xf]
    %v876 = vld [vmem:[%s873 + $0x8] sm:$0xf]
    %v877 = vld [vmem:[%s873 + $0xc] sm:$0xf]
    %v878 = vld [vmem:[%s873 + $0x10] sm:$0xf]
    %v879 = vld [vmem:[%s873 + $0x14] sm:$0xf]
    %v880 = vld [vmem:[%s873 + $0x18] sm:$0xf]
    %v881 = vld [vmem:[%s873 + $0x1c] sm:$0xf]
    %v882 = vld [vmem:[%s873 + $0x20] sm:$0xf]
    %v883 = vld [vmem:[%s873 + $0x24] sm:$0xf]
    %v884 = vld [vmem:[%s873 + $0x28] sm:$0xf]
    %v885 = vld [vmem:[%s873 + $0x2c] sm:$0xf]
    %v886 = vld [vmem:[%s873 + $0x30] sm:$0xf]
    %v887 = vld [vmem:[%s873 + $0x34] sm:$0xf]
    %v888 = vld [vmem:[%s873 + $0x38] sm:$0xf]
    %v889 = vld [vmem:[%s873 + $0x3c] sm:$0xf]
    %s890 = scalar_lea.vmem %s2, 5
    %v891 = vld [vmem:[%s890] sm:$0x1]
    %v893 = vlaneseq
    %v894 = vshrl.u32 %v893, 7
    %v895 = vsub.s32 0, %v894
    %v896 = vrot.slane %v891, %v895
    %v914 = vunpack.c.l.b16 %v874
    %v915 = vunpack.c.l.b16 %v875
    %v916 = vunpack.c.l.b16 %v876
    %v917 = vunpack.c.l.b16 %v877
    %v918 = vunpack.c.l.b16 %v878
    %v919 = vunpack.c.l.b16 %v879
    %v920 = vunpack.c.l.b16 %v880
    %v921 = vunpack.c.l.b16 %v881
    %v922 = vunpack.c.l.b16 %v882
    %v923 = vunpack.c.l.b16 %v883
    %v924 = vunpack.c.l.b16 %v884
    %v925 = vunpack.c.l.b16 %v885
    %v926 = vunpack.c.l.b16 %v886
    %v927 = vunpack.c.l.b16 %v887
    %v928 = vunpack.c.l.b16 %v888
    %v929 = vunpack.c.l.b16 %v889
    %v930 = vpack.c.b16 %v915, %v914
    %v931 = vpack.c.b16 %v917, %v916
    %v932 = vpack.c.b16 %v919, %v918
    %v933 = vpack.c.b16 %v921, %v920
    %v934 = vpack.c.b16 %v923, %v922
    %v935 = vpack.c.b16 %v925, %v924
    %v936 = vpack.c.b16 %v927, %v926
    %v937 = vpack.c.b16 %v929, %v928
    %946 = vmatprep.subr.bf16.mxu0 0
    %947 = vmatpush1.bf16.msra.mxu0 %v930
    %948 = vmatprep.subr.bf16.mxu0 0
    %949 = vmatpush1.bf16.msra.mxu0 %v931
    %950 = vmatprep.subr.bf16.mxu0 0
    %951 = vmatpush1.bf16.msra.mxu0 %v932
    %952 = vmatprep.subr.bf16.mxu0 0
    %953 = vmatpush1.bf16.msra.mxu0 %v933
    %954 = vmatprep.subr.bf16.mxu0 0
    %955 = vmatpush1.bf16.msra.mxu0 %v934
    %956 = vmatprep.subr.bf16.mxu0 0
    %957 = vmatpush1.bf16.msra.mxu0 %v935
    %958 = vmatprep.subr.bf16.mxu0 0
    %959 = vmatpush1.bf16.msra.mxu0 %v936
    %960 = vmatprep.subr.bf16.mxu0 0
    %961 = vmatpush1.bf16.msra.mxu0 %v937
    %962 = vmatprep.subr.bf16.mxu0 0
    %963 = vmatpush1.bf16.msra.mxu0 0
    %964 = vmatprep.subr.bf16.mxu0 0
    %965 = vmatpush1.bf16.msra.mxu0 0
    %966 = vmatprep.subr.bf16.mxu0 0
    %967 = vmatpush1.bf16.msra.mxu0 0
    %968 = vmatprep.subr.bf16.mxu0 0
    %969 = vmatpush1.bf16.msra.mxu0 0
    %970 = vmatprep.subr.bf16.mxu0 0
    %971 = vmatpush1.bf16.msra.mxu0 0
    %972 = vmatprep.subr.bf16.mxu0 0
    %973 = vmatpush1.bf16.msra.mxu0 0
    %974 = vmatprep.subr.bf16.mxu0 0
    %975 = vmatpush1.bf16.msra.mxu0 0
    %976 = vmatprep.subr.bf16.mxu0 0
    %977 = vmatpush1.bf16.msra.mxu0 0
    %978 = vmatprep.mubr.bf16.mxu0 0
    %979 = vmatmul.mubr.bf16.gmra.mrb[0].mxu0 %v872
    %v980 = vpop.f32.mrb[0].mxu0
    %v981 = vadd.f32 %v896, %v980
    %v982 = vpop.f32.mrb[0].mxu0
    %v983 = vpop.f32.mrb[0].mxu0
    %v984 = vadd.f32 %v896, %v983
    %v985 = vpop.f32.mrb[0].mxu0
    %986 = vdwg.mxu0
    %v987 = vmul.f32 %v44, %v981
    %v988 = vmul.f32 %v45, %v984
    %v989 = vadd.f32 %v987, %v870
    %v990 = vadd.f32 %v988, %v871
    %991 = vadd.xlane.f32.xlu0 %v989
    %v992 = vpop.xlane.xlu0 %991
    %993 = vadd.xlane.f32.xlu0 %v990
    %v994 = vpop.xlane.xlu0 %993
    %v995 = vmul.f32 %v992, 0.0125
    %v996 = vmul.f32 %v994, 0.0125
    %v997 = vmul.f32 %v989, %v989
    %v998 = vmul.f32 %v990, %v990
    %999 = vadd.xlane.f32.xlu0 %v997
    %v1000 = vpop.xlane.xlu0 %999
    %1001 = vadd.xlane.f32.xlu0 %v998
    %v1002 = vpop.xlane.xlu0 %1001
    %v1003 = vmul.f32 %v1000, 0.0125
    %v1004 = vmul.f32 %v1002, 0.0125
    %v1005 = vmul.f32 %v995, %v995
    %v1006 = vmul.f32 %v996, %v996
    %v1007 = vsub.f32 %v1003, %v1005
    %v1008 = vsub.f32 %v1004, %v1006
    %v1009 = vsub.f32 %v989, %v995
    %v1010 = vsub.f32 %v990, %v996
    %v1011 = vadd.f32 %v1007, 1e-05
    %v1012 = vadd.f32 %v1008, 1e-05
    %v1013 = vrsqrt.pop %v1011
    %v1014 = vrsqrt.pop %v1012
    %v1015 = vmul.f32 %v1009, %v1013
    %v1016 = vmul.f32 %v1010, %v1014
    %s1017 = scalar_lea.vmem %s3, 5
    %v1018 = vld [vmem:[%s1017] sm:$0x1]
    %v1020 = vlaneseq
    %v1021 = vshrl.u32 %v1020, 7
    %v1022 = vsub.s32 0, %v1021
    %v1023 = vrot.slane %v1018, %v1022
    %v1025 = vmul.f32 %v1015, %v1023
    %v1026 = vmul.f32 %v1016, %v1023
    %s1027 = scalar_lea.vmem %s4, 5
    %v1028 = vld [vmem:[%s1027] sm:$0x1]
    %v1030 = vlaneseq
    %v1031 = vshrl.u32 %v1030, 7
    %v1032 = vsub.s32 0, %v1031
    %v1033 = vrot.slane %v1028, %v1032
    %v1035 = vadd.f32 %v1025, %v1033
    %v1036 = vadd.f32 %v1026, %v1033
    %v1037 = vpack.c.bf16 %v1036, %v1035
    %v1038 = vld [vmem:[%s5] sm:$0xf]
    %v1039 = vld [vmem:[%s5 + $0x4] sm:$0xf]
    %v1040 = vld [vmem:[%s5 + $0x8] sm:$0xf]
    %v1041 = vld [vmem:[%s5 + $0xc] sm:$0xf]
    %v1042 = vld [vmem:[%s5 + $0x10] sm:$0xf]
    %v1043 = vld [vmem:[%s5 + $0x14] sm:$0xf]
    %v1044 = vld [vmem:[%s5 + $0x18] sm:$0xf]
    %v1045 = vld [vmem:[%s5 + $0x1c] sm:$0xf]
    %v1046 = vld [vmem:[%s5 + $0x20] sm:$0xf]
    %v1047 = vld [vmem:[%s5 + $0x24] sm:$0xf]
    %v1048 = vld [vmem:[%s5 + $0x28] sm:$0xf]
    %v1049 = vld [vmem:[%s5 + $0x2c] sm:$0xf]
    %v1050 = vld [vmem:[%s5 + $0x30] sm:$0xf]
    %v1051 = vld [vmem:[%s5 + $0x34] sm:$0xf]
    %v1052 = vld [vmem:[%s5 + $0x38] sm:$0xf]
    %v1053 = vld [vmem:[%s5 + $0x3c] sm:$0xf]
    %v1054 = vld [vmem:[%s6] sm:$0x1]
    %v1056 = vlaneseq
    %v1057 = vshrl.u32 %v1056, 7
    %v1058 = vsub.s32 0, %v1057
    %v1059 = vrot.slane %v1054, %v1058
    %v1077 = vunpack.c.l.b16 %v1038
    %v1078 = vunpack.c.l.b16 %v1039
    %v1079 = vunpack.c.l.b16 %v1040
    %v1080 = vunpack.c.l.b16 %v1041
    %v1081 = vunpack.c.l.b16 %v1042
    %v1082 = vunpack.c.l.b16 %v1043
    %v1083 = vunpack.c.l.b16 %v1044
    %v1084 = vunpack.c.l.b16 %v1045
    %v1085 = vunpack.c.l.b16 %v1046
    %v1086 = vunpack.c.l.b16 %v1047
    %v1087 = vunpack.c.l.b16 %v1048
    %v1088 = vunpack.c.l.b16 %v1049
    %v1089 = vunpack.c.l.b16 %v1050
    %v1090 = vunpack.c.l.b16 %v1051
    %v1091 = vunpack.c.l.b16 %v1052
    %v1092 = vunpack.c.l.b16 %v1053
    %v1093 = vpack.c.b16 %v1078, %v1077
    %v1094 = vpack.c.b16 %v1080, %v1079
    %v1095 = vpack.c.b16 %v1082, %v1081
    %v1096 = vpack.c.b16 %v1084, %v1083
    %v1097 = vpack.c.b16 %v1086, %v1085
    %v1098 = vpack.c.b16 %v1088, %v1087
    %v1099 = vpack.c.b16 %v1090, %v1089
    %v1100 = vpack.c.b16 %v1092, %v1091
    %1109 = vmatprep.subr.bf16.mxu0 0
    %1110 = vmatpush1.bf16.msra.mxu0 %v1093
    %1111 = vmatprep.subr.bf16.mxu0 0
    %1112 = vmatpush1.bf16.msra.mxu0 %v1094
    %1113 = vmatprep.subr.bf16.mxu0 0
    %1114 = vmatpush1.bf16.msra.mxu0 %v1095
    %1115 = vmatprep.subr.bf16.mxu0 0
    %1116 = vmatpush1.bf16.msra.mxu0 %v1096
    %1117 = vmatprep.subr.bf16.mxu0 0
    %1118 = vmatpush1.bf16.msra.mxu0 %v1097
    %1119 = vmatprep.subr.bf16.mxu0 0
    %1120 = vmatpush1.bf16.msra.mxu0 %v1098
    %1121 = vmatprep.subr.bf16.mxu0 0
    %1122 = vmatpush1.bf16.msra.mxu0 %v1099
    %1123 = vmatprep.subr.bf16.mxu0 0
    %1124 = vmatpush1.bf16.msra.mxu0 %v1100
    %1125 = vmatprep.subr.bf16.mxu0 0
    %1126 = vmatpush1.bf16.msra.mxu0 0
    %1127 = vmatprep.subr.bf16.mxu0 0
    %1128 = vmatpush1.bf16.msra.mxu0 0
    %1129 = vmatprep.subr.bf16.mxu0 0
    %1130 = vmatpush1.bf16.msra.mxu0 0
    %1131 = vmatprep.subr.bf16.mxu0 0
    %1132 = vmatpush1.bf16.msra.mxu0 0
    %1133 = vmatprep.subr.bf16.mxu0 0
    %1134 = vmatpush1.bf16.msra.mxu0 0
    %1135 = vmatprep.subr.bf16.mxu0 0
    %1136 = vmatpush1.bf16.msra.mxu0 0
    %1137 = vmatprep.subr.bf16.mxu0 0
    %1138 = vmatpush1.bf16.msra.mxu0 0
    %1139 = vmatprep.subr.bf16.mxu0 0
    %1140 = vmatpush1.bf16.msra.mxu0 0
    %1141 = vmatprep.mubr.bf16.mxu0 0
    %1142 = vmatmul.mubr.bf16.gmra.mrb[0].mxu0 %v1037
    %v1143 = vpop.f32.mrb[0].mxu0
    %v1144 = vadd.f32 %v1059, %v1143
    %v1145 = vpop.f32.mrb[0].mxu0
    %v1146 = vpop.f32.mrb[0].mxu0
    %v1147 = vadd.f32 %v1059, %v1146
    %v1148 = vpop.f32.mrb[0].mxu0
    %1149 = vdwg.mxu0
    %v1150 = vmax.f32 %v1144, 0.0
    %v1151 = vmax.f32 %v1147, 0.0
    %v1152 = vpack.c.bf16 %v1151, %v1150
    %v1153 = vld [vmem:[%s7] sm:$0xf]
    %v1154 = vld [vmem:[%s7 + $0x4] sm:$0xf]
    %v1155 = vld [vmem:[%s7 + $0x8] sm:$0xf]
    %v1156 = vld [vmem:[%s7 + $0xc] sm:$0xf]
    %v1157 = vld [vmem:[%s7 + $0x10] sm:$0xf]
    %v1158 = vld [vmem:[%s7 + $0x14] sm:$0xf]
    %v1159 = vld [vmem:[%s7 + $0x18] sm:$0xf]
    %v1160 = vld [vmem:[%s7 + $0x1c] sm:$0xf]
    %v1161 = vld [vmem:[%s7 + $0x20] sm:$0xf]
    %v1162 = vld [vmem:[%s7 + $0x24] sm:$0xf]
    %v1163 = vld [vmem:[%s7 + $0x28] sm:$0xf]
    %v1164 = vld [vmem:[%s7 + $0x2c] sm:$0xf]
    %v1165 = vld [vmem:[%s7 + $0x30] sm:$0xf]
    %v1166 = vld [vmem:[%s7 + $0x34] sm:$0xf]
    %v1167 = vld [vmem:[%s7 + $0x38] sm:$0xf]
    %v1168 = vld [vmem:[%s7 + $0x3c] sm:$0xf]
    %v1169 = vld [vmem:[%s8] sm:$0x1]
    %v1171 = vlaneseq
    %v1172 = vshrl.u32 %v1171, 7
    %v1173 = vsub.s32 0, %v1172
    %v1174 = vrot.slane %v1169, %v1173
    %v1192 = vunpack.c.l.b16 %v1153
    %v1193 = vunpack.c.l.b16 %v1154
    %v1194 = vunpack.c.l.b16 %v1155
    %v1195 = vunpack.c.l.b16 %v1156
    %v1196 = vunpack.c.l.b16 %v1157
    %v1197 = vunpack.c.l.b16 %v1158
    %v1198 = vunpack.c.l.b16 %v1159
    %v1199 = vunpack.c.l.b16 %v1160
    %v1200 = vunpack.c.l.b16 %v1161
    %v1201 = vunpack.c.l.b16 %v1162
    %v1202 = vunpack.c.l.b16 %v1163
    %v1203 = vunpack.c.l.b16 %v1164
    %v1204 = vunpack.c.l.b16 %v1165
    %v1205 = vunpack.c.l.b16 %v1166
    %v1206 = vunpack.c.l.b16 %v1167
    %v1207 = vunpack.c.l.b16 %v1168
    %v1208 = vpack.c.b16 %v1193, %v1192
    %v1209 = vpack.c.b16 %v1195, %v1194
    %v1210 = vpack.c.b16 %v1197, %v1196
    %v1211 = vpack.c.b16 %v1199, %v1198
    %v1212 = vpack.c.b16 %v1201, %v1200
    %v1213 = vpack.c.b16 %v1203, %v1202
    %v1214 = vpack.c.b16 %v1205, %v1204
    %v1215 = vpack.c.b16 %v1207, %v1206
    %1224 = vmatprep.subr.bf16.mxu0 0
    %1225 = vmatpush1.bf16.msra.mxu0 %v1208
    %1226 = vmatprep.subr.bf16.mxu0 0
    %1227 = vmatpush1.bf16.msra.mxu0 %v1209
    %1228 = vmatprep.subr.bf16.mxu0 0
    %1229 = vmatpush1.bf16.msra.mxu0 %v1210
    %1230 = vmatprep.subr.bf16.mxu0 0
    %1231 = vmatpush1.bf16.msra.mxu0 %v1211
    %1232 = vmatprep.subr.bf16.mxu0 0
    %1233 = vmatpush1.bf16.msra.mxu0 %v1212
    %1234 = vmatprep.subr.bf16.mxu0 0
    %1235 = vmatpush1.bf16.msra.mxu0 %v1213
    %1236 = vmatprep.subr.bf16.mxu0 0
    %1237 = vmatpush1.bf16.msra.mxu0 %v1214
    %1238 = vmatprep.subr.bf16.mxu0 0
    %1239 = vmatpush1.bf16.msra.mxu0 %v1215
    %1240 = vmatprep.subr.bf16.mxu0 0
    %1241 = vmatpush1.bf16.msra.mxu0 0
    %1242 = vmatprep.subr.bf16.mxu0 0
    %1243 = vmatpush1.bf16.msra.mxu0 0
    %1244 = vmatprep.subr.bf16.mxu0 0
    %1245 = vmatpush1.bf16.msra.mxu0 0
    %1246 = vmatprep.subr.bf16.mxu0 0
    %1247 = vmatpush1.bf16.msra.mxu0 0
    %1248 = vmatprep.subr.bf16.mxu0 0
    %1249 = vmatpush1.bf16.msra.mxu0 0
    %1250 = vmatprep.subr.bf16.mxu0 0
    %1251 = vmatpush1.bf16.msra.mxu0 0
    %1252 = vmatprep.subr.bf16.mxu0 0
    %1253 = vmatpush1.bf16.msra.mxu0 0
    %1254 = vmatprep.subr.bf16.mxu0 0
    %1255 = vmatpush1.bf16.msra.mxu0 0
    %1256 = vmatprep.mubr.bf16.mxu0 0
    %1257 = vmatmul.mubr.bf16.gmra.mrb[0].mxu0 %v1152
    %v1258 = vpop.f32.mrb[0].mxu0
    %v1259 = vadd.f32 %v1174, %v1258
    %v1260 = vpop.f32.mrb[0].mxu0
    %v1261 = vpop.f32.mrb[0].mxu0
    %v1262 = vadd.f32 %v1174, %v1261
    %v1263 = vpop.f32.mrb[0].mxu0
    %1264 = vdwg.mxu0
    %v1265 = vmax.f32 %v1259, 0.0
    %v1266 = vmax.f32 %v1262, 0.0
    %v1267 = vpack.c.bf16 %v1266, %v1265
    %v1268 = vld [vmem:[%s9] sm:$0x1]
    %v1269 = vld [vmem:[#allocation2] sm:$0x1]
    %1271 = vset.pattern.permute.xlu0 0
    %1272 = vperm.xlu0 %1271, %v1269
    %v1273 = vpop.permute.xlu0 %1272
    %v1275 = vlaneseq
    %v1276 = vshrl.u32 %v1275, 7
    %v1277 = vsub.s32 0, %v1276
    %v1278 = vrot.slane %v1273, %v1277
    %1279 = vmatprep.subr.bf16.mxu0 0
    %1280 = vmatpush1.bf16.xpose.msra.mxu0 %v1267
    %1281 = vmatprep.subr.bf16.mxu0 0
    %1282 = vmatpush1.bf16.xpose.msra.mxu0 0
    %1283 = vmatprep.subr.bf16.mxu0 0
    %1284 = vmatpush1.bf16.xpose.msra.mxu0 0
    %1285 = vmatprep.subr.bf16.mxu0 0
    %1286 = vmatpush1.bf16.xpose.msra.mxu0 0
    %1287 = vmatprep.subr.bf16.mxu0 0
    %1288 = vmatpush1.bf16.xpose.msra.mxu0 0
    %1289 = vmatprep.subr.bf16.mxu0 0
    %1290 = vmatpush1.bf16.xpose.msra.mxu0 0
    %1291 = vmatprep.subr.bf16.mxu0 0
    %1292 = vmatpush1.bf16.xpose.msra.mxu0 0
    %1293 = vmatprep.subr.bf16.mxu0 0
    %1294 = vmatpush1.bf16.xpose.msra.mxu0 0
    %1295 = vmatprep.subr.bf16.mxu0 0
    %1296 = vmatpush1.bf16.xpose.msra.mxu0 0
    %1297 = vmatprep.subr.bf16.mxu0 0
    %1298 = vmatpush1.bf16.xpose.msra.mxu0 0
    %1299 = vmatprep.subr.bf16.mxu0 0
    %1300 = vmatpush1.bf16.xpose.msra.mxu0 0
    %1301 = vmatprep.subr.bf16.mxu0 0
    %1302 = vmatpush1.bf16.xpose.msra.mxu0 0
    %1303 = vmatprep.subr.bf16.mxu0 0
    %1304 = vmatpush1.bf16.xpose.msra.mxu0 0
    %1305 = vmatprep.subr.bf16.mxu0 0
    %1306 = vmatpush1.bf16.xpose.msra.mxu0 0
    %1307 = vmatprep.subr.bf16.mxu0 0
    %1308 = vmatpush1.bf16.xpose.msra.mxu0 0
    %1309 = vmatprep.subr.bf16.mxu0 0
    %1310 = vmatpush1.bf16.xpose.msra.mxu0 0
    %1311 = vmatprep.mubr.bf16.mxu0 0
    %1312 = vmatmul.mubr.bf16.gmra.mrb[0].mxu0 %v1268
    %v1313 = vpop.f32.mrb[0].mxu0
    %v1314 = vadd.f32 %v1278, %v1313
    %v1315 = vpop.f32.mrb[0].mxu0
    %v1316 = vpop.f32.mrb[0].mxu0
    %v1317 = vpop.f32.mrb[0].mxu0
    %1318 = vdwg.mxu0
    %vm1319 = vcmask 122880
    %1320 = vst.msk [vmem:[#allocation3] sm:$0x1] %vm1319, %v1314
    // Predicated region
    $region46: #{dcnv2_forward.1} parent=1 // pred_check
      _
    $region47: #{dcnv2_forward.1} parent=1 // pred_check_branch
      %1322 = sbr.rel (0) target = $region49
    $region48: #{dcnv2_forward.1} parent=1 // pred_region
      %s1324 = ssub.s32 16, 16
      %1325 = vsyncadd [#allocation4], %s1324
      %s1327 = sshll.u32 [#allocation3], 4
      %s1328 = int_to_ptr.vmem [resolvable:$true] %s1327
      %1330 = dma.vmem_to_hbm [thread:$0]  %s1328, 16, %s11, [#allocation4]
    $region49: #{dcnv2_forward.1} parent=1 // pred_fallthru
      _
    // Predicated region
    $region50: #{dcnv2_forward.1} parent=1 // pred_check
      _
    $region51: #{dcnv2_forward.1} parent=1 // pred_check_branch
      %1332 = sbr.rel (0) target = $region53
    $region52: #{dcnv2_forward.1} parent=1 // pred_region
      %1333 = dma.done [#allocation4], 16
    $region53: #{dcnv2_forward.1} parent=1 // pred_fallthru
      _
    %1334 = vsyncpa [#allocation4], 1

</llo_original>
